<compile_context>
chip_gen: v7x
topology: tpu7x:2x2x1
jax: 0.10.0
libtpu: 0.0.40
codegen_flags: <defaults>
</compile_context>

<pallas_src>
import math
import numpy as np

import jax
import jax.numpy as jnp
from jax import lax
from jax.experimental import pallas as pl
from jax.experimental.pallas import tpu as pltpu


def _round_up(x, m):
    return ((x + m - 1) // m) * m


def _pick_time_block(seq_len, max_block=16):
    """Largest divisor of seq_len not exceeding max_block."""
    for t in range(min(seq_len, max_block), 0, -1):
        if seq_len % t == 0:
            return t
    return 1


# ----------------------------------------------------------------------------
# Pallas kernel: one (direction, time-chunk) grid step of the recurrent scan.
# ----------------------------------------------------------------------------
def _rnn_layer_kernel(x_ref, h0_ref, wih_ref, whh_ref, b_ref, out_ref,
                      h_scr, p_scr):
    d = pl.program_id(0)        # direction (parallel axis)
    c = pl.program_id(1)        # time chunk (arbitrary axis, sequential carry)

    # (Re)initialize the carried hidden state at the start of each direction.
    @pl.when(c == 0)
    def _():
        h_scr[...] = h0_ref[...].astype(jnp.float32)

    t_blk, b_pad, i_pad = x_ref.shape
    h_pad = h_scr.shape[-1]

    # Chunk-wide input projection: one big MXU matmul (M = t_blk * b_pad),
    # independent of the recurrence -> hoisted off the serial carry chain.
    x_mat = x_ref[...].reshape(t_blk * b_pad, i_pad)
    proj = jnp.dot(x_mat, wih_ref[...], preferred_element_type=jnp.float32)
    proj = proj + b_ref[...]                         # + (1, h_pad) broadcast
    p_scr[...] = proj.reshape(t_blk, b_pad, h_pad)

    whh = whh_ref[...]
    reverse = d == 1            # direction 1 scans time backwards

    def step(i, h):
        j = jnp.where(reverse, t_blk - 1 - i, i)     # local time index in chunk
        h_new = jnp.tanh(p_scr[j] +
                         jnp.dot(h, whh, preferred_element_type=jnp.float32))
        out_ref[j] = h_new.astype(out_ref.dtype)
        return h_new

    h_scr[...] = lax.fori_loop(0, t_blk, step, h_scr[...], unroll=True)


def run_rnn_layer(x_p, h0_p, wih_p, whh_p, b_p, *, t_blk):
    """Run one layer (all directions) over the full padded sequence.

    x_p:   (S, B_pad, I_pad)          padded input sequence (shared by dirs)
    h0_p:  (nd, B_pad, H_pad)         padded initial hidden per direction
    wih_p: (nd, I_pad, H_pad)         padded W_ih.T per direction
    whh_p: (nd, H_pad, H_pad)         padded W_hh.T per direction
    b_p:   (nd, 1, H_pad)             padded (b_ih + b_hh) per direction
    Returns (nd, S, B_pad, H_pad): hidden state at every timestep, already in
    original time order for both directions.
    """
    S, B_pad, I_pad = x_p.shape
    nd, _, H_pad = h0_p.shape
    assert S % t_blk == 0
    n_chunks = S // t_blk

    def time_block(d, c):
        # forward: chunks 0..n-1; backward: chunks n-1..0 (reversal for free).
        return jnp.where(d == 0, c, (n_chunks - 1) - c)

    out = pl.pallas_call(
        _rnn_layer_kernel,
        out_shape=jax.ShapeDtypeStruct((nd, S, B_pad, H_pad), x_p.dtype),
        grid_spec=pltpu.PrefetchScalarGridSpec(
            num_scalar_prefetch=0,
            grid=(nd, n_chunks),
            in_specs=[
                # x chunk (lane-dense: I_pad multiple of 128)
                pl.BlockSpec((t_blk, B_pad, I_pad),
                             lambda d, c: (time_block(d, c), 0, 0)),
                # per-direction constants (index changes only with d)
                pl.BlockSpec((None, B_pad, H_pad), lambda d, c: (d, 0, 0)),  # h0
                pl.BlockSpec((None, I_pad, H_pad), lambda d, c: (d, 0, 0)),  # W_ih.T
                pl.BlockSpec((None, H_pad, H_pad), lambda d, c: (d, 0, 0)),  # W_hh.T
                pl.BlockSpec((None, 1, H_pad), lambda d, c: (d, 0, 0)),      # bias
            ],
            out_specs=pl.BlockSpec((None, t_blk, B_pad, H_pad),
                                   lambda d, c: (d, time_block(d, c), 0, 0)),
            scratch_shapes=[
                pltpu.VMEM((B_pad, H_pad), jnp.float32),          # carried h
                pltpu.VMEM((t_blk, B_pad, H_pad), jnp.float32),   # chunk projection
            ],
        ),
        compiler_params=pltpu.CompilerParams(
            # direction axis can be sharded across TensorCores (v7x megacore);
            # time axis carries state -> sequential.
            dimension_semantics=("parallel", "arbitrary")),
    )(x_p, h0_p, wih_p, whh_p, b_p)
    return out


# ----------------------------------------------------------------------------
# Module wrapper (parameter setup, padding, layer/direction glue in plain JAX).
# ----------------------------------------------------------------------------
class CustomRNNPallas:
    def __init__(self, input_size, hidden_size, num_layers=1, bias=True,
                 batch_first=False, dropout=0.0, bidirectional=False,
                 key=None):
        assert not batch_first, "batch_first=True is not supported (matches reference)"
        assert dropout == 0.0, "inter-layer dropout not implemented"
        self.input_size = input_size
        self.hidden_size = hidden_size
        self.num_layers = num_layers
        self.bias = bias
        self.dropout = dropout
        self.bidirectional = bidirectional
        self.num_directions = 2 if bidirectional else 1

        if key is None:
            key = jax.random.PRNGKey(0)

        H = hidden_size
        nd = self.num_directions
        self._H_pad = _round_up(H, 128)
        self._I0_pad = _round_up(input_size, 128)

        # Unpadded params (used by the pure-JAX reference).
        self.params = {}
        k = 1.0 / math.sqrt(hidden_size)
        for layer in range(num_layers):
            for direction in range(nd):
                layer_in = input_size if layer == 0 else H * nd
                key, k1, k2, k3, k4 = jax.random.split(key, 5)
                w_ih = jax.random.uniform(k1, (H, layer_in), jnp.float32, -k, k)
                w_hh = jax.random.uniform(k2, (H, H), jnp.float32, -k, k)
                if bias:
                    b_ih = jax.random.uniform(k3, (H,), jnp.float32, -k, k)
                    b_hh = jax.random.uniform(k4, (H,), jnp.float32, -k, k)
                else:
                    b_ih = jnp.zeros((H,), jnp.float32)
                    b_hh = jnp.zeros((H,), jnp.float32)
                # Pre-transpose weights; fold both biases into one row vector.
                self.params[(layer, direction)] = (
                    jnp.asarray(w_ih.T),                   # (in, H)
                    jnp.asarray(w_hh.T),                   # (H, H)
                    (b_ih + b_hh).reshape(1, H),           # (1, H)
                )

        # Padded + per-direction-stacked params used by the Pallas kernel.
        # Layer-l>0 input layout is the kernel's padded output layout:
        #   features = [dir0: H_pad slots (first H real) | dir1: H_pad slots ...]
        H_pad = self._H_pad
        self.packed = []
        for layer in range(num_layers):
            I_pad = self._I0_pad if layer == 0 else nd * H_pad
            wihs, whhs, bs = [], [], []
            for direction in range(nd):
                wih_t, whh_t, b_row = self.params[(layer, direction)]
                wih_pad = jnp.zeros((I_pad, H_pad), jnp.float32)
                if layer == 0:
                    wih_pad = wih_pad.at[:input_size, :H].set(wih_t)
                else:
                    for dd in range(nd):
                        wih_pad = wih_pad.at[
                            dd * H_pad: dd * H_pad + H, :H
                        ].set(wih_t[dd * H:(dd + 1) * H, :])
                whh_pad = jnp.zeros((H_pad, H_pad), jnp.float32)
                whh_pad = whh_pad.at[:H, :H].set(whh_t)
                b_pad = jnp.zeros((1, H_pad), jnp.float32).at[:, :H].set(b_row)
                wihs.append(wih_pad)
                whhs.append(whh_pad)
                bs.append(b_pad)
            self.packed.append(
                (jnp.stack(wihs), jnp.stack(whhs), jnp.stack(bs)))

    def __call__(self, x, h_0=None):
        """x: (seq_len, batch, input_size) -> (output, h_l)
        output: (seq_len, batch, num_directions * hidden_size)
        h_l: list of (batch, hidden_size), length num_layers * num_directions
        """
        S, B, I = x.shape
        nd = self.num_directions
        H = self.hidden_size
        H_pad = self._H_pad
        B_pad = _round_up(max(B, 8), 8)
        t_blk = _pick_time_block(S)
        dtype = x.dtype

        if h_0 is None:
            h_0 = jnp.zeros((self.num_layers * nd, B, H), dtype)
        h_l = [h_0[i] for i in range(self.num_layers * nd)]

        # Pad layer-0 input once: (S, B_pad, I0_pad); padded slots are zero.
        I0_pad = self._I0_pad
        layer_in_p = jnp.zeros((S, B_pad, I0_pad), dtype).at[:, :B, :I].set(x)

        out_p = None
        for l in range(self.num_layers):
            wih_p, whh_p, b_p = self.packed[l]

            h0_p = jnp.zeros((nd, B_pad, H_pad), dtype)
            for dd in range(nd):
                h0_p = h0_p.at[dd, :B, :H].set(h_l[nd * l + dd].astype(dtype))

            out_p = run_rnn_layer(layer_in_p, h0_p, wih_p, whh_p, b_p,
                                  t_blk=t_blk)     # (nd, S, B_pad, H_pad)

            # Final hidden state per direction (no dedicated kernel output):
            # forward -> state at last step, backward -> state at step 0.
            h_l[nd * l + 0] = out_p[0, S - 1, :B, :H]
            if nd == 2:
                h_l[nd * l + 1] = out_p[1, 0, :B, :H]

            if l + 1 < self.num_layers:
                # Next layer consumes the padded layout directly (no unpadding
                # round-trip through HBM): features = [dir0 H_pad | dir1 H_pad].
                layer_in_p = jnp.transpose(out_p, (1, 2, 0, 3)).reshape(
                    S, B_pad, nd * H_pad)

        # Unpad the last layer's output: (S, B, nd * H).
        outs = [out_p[dd, :, :B, :H] for dd in range(nd)]
        output = outs[0] if nd == 1 else jnp.concatenate(outs, axis=2)
        return output, h_l

    # Pure-JAX reference (lax.scan) for correctness checking.
    def _reference(self, x, h_0=None):
        S, B, _ = x.shape
        nd = self.num_directions
        if h_0 is None:
            h_0 = jnp.zeros((self.num_layers * nd, B, self.hidden_size), x.dtype)
        h_l = [h_0[i] for i in range(self.num_layers * nd)]

        def run_dir(seq, h0, p):
            wih_t, whh_t, b = p

            def step(h, xt):
                hn = jnp.tanh(xt @ wih_t + h @ whh_t + b)
                return hn, hn

            hT, outs = lax.scan(step, h0, seq)
            return outs, hT

        last = None
        for l in range(self.num_layers):
            layer_input = x if l == 0 else last
            out_fw, hn_fw = run_dir(layer_input, h_l[nd * l + 0],
                                    self.params[(l, 0)])
            h_l[nd * l + 0] = hn_fw
            if self.bidirectional:
                out_bw_rev, hn_bw = run_dir(layer_input[::-1], h_l[nd * l + 1],
                                            self.params[(l, 1)])
                h_l[nd * l + 1] = hn_bw
                last = jnp.concatenate([out_fw, out_bw_rev[::-1]], axis=2)
            else:
                last = out_fw
        return last, h_l


if __name__ == "__main__":
    SEQ, BATCH, IN, HID = 8, 2, 16, 32
    key = jax.random.PRNGKey(0)
    k_x, k_h, k_p = jax.random.split(key, 3)

    x = jax.random.normal(k_x, (SEQ, BATCH, IN), jnp.float32)
    model = CustomRNNPallas(IN, HID, num_layers=2, bias=True,
                            dropout=0.0, bidirectional=True, key=k_p)
    h_0 = jax.random.normal(
        k_h, (model.num_layers * model.num_directions, BATCH, HID), jnp.float32)

    out, h_n = model(x, h_0)
    out = jax.block_until_ready(out)
    h_n = [jax.block_until_ready(h) for h in h_n]

    # Validate against the pure-JAX lax.scan reference.
    out_ref, h_ref = model._reference(x, h_0)
    np.testing.assert_allclose(np.asarray(out), np.asarray(out_ref),
                               rtol=1e-5, atol=1e-5)
    for a, b in zip(h_n, h_ref):
        np.testing.assert_allclose(np.asarray(a), np.asarray(b),
                                   rtol=1e-5, atol=1e-5)

    assert out.shape == (SEQ, BATCH, model.num_directions * HID)
    print("KERNEL_OK")
</pallas_src>

<mosaic_0001>
module attributes {stable_mosaic.version = 11 : i64} {
  func.func @_rnn_layer_kernel(%arg0: i32, %arg1: i32, %arg2: memref<8x8x128xf32, #tpu.memory_space<vmem>>, %arg3: memref<1x8x128xf32, #tpu.memory_space<vmem>>, %arg4: memref<1x128x128xf32, #tpu.memory_space<vmem>>, %arg5: memref<1x128x128xf32, #tpu.memory_space<vmem>>, %arg6: memref<1x1x128xf32, #tpu.memory_space<vmem>>, %arg7: memref<1x8x8x128xf32, #tpu.memory_space<vmem>>, %arg8: memref<8x128xf32, #tpu.memory_space<vmem>>, %arg9: memref<8x8x128xf32, #tpu.memory_space<vmem>>) attributes {dimension_semantics = [#tpu.dimension_semantics<parallel>, #tpu.dimension_semantics<arbitrary>], iteration_bounds = array<i64: 2, 1>, scalar_prefetch = 0 : i64, scratch_operands = 2 : i64, tpu.core_type = #tpu.core_type<tc>, window_params = [{transform_indices = @transform_0, window_bounds = array<i64: 8, 8, 128>}, {transform_indices = @transform_1, window_bounds = array<i64: 1, 8, 128>}, {transform_indices = @transform_2, window_bounds = array<i64: 1, 128, 128>}, {transform_indices = @transform_3, window_bounds = array<i64: 1, 128, 128>}, {transform_indices = @transform_4, window_bounds = array<i64: 1, 1, 128>}, {transform_indices = @transform_5, window_bounds = array<i64: 1, 8, 8, 128>}]} {
    %c0_i32 = arith.constant 0 : i32
    %0 = arith.cmpi eq, %arg1, %c0_i32 : i32
    %1 = arith.extui %0 : i1 to i32
    %c0_i32_0 = arith.constant 0 : i32
    %2 = arith.cmpi ne, %1, %c0_i32_0 : i32
    scf.if %2 {
      %c0_77 = arith.constant 0 : index
      %c0_78 = arith.constant 0 : index
      %c0_79 = arith.constant 0 : index
      %115 = vector.load %arg3[%c0_77, %c0_78, %c0_79] : memref<1x8x128xf32, #tpu.memory_space<vmem>>, vector<1x8x128xf32>
      %116 = vector.shape_cast %115 : vector<1x8x128xf32> to vector<8x128xf32>
      %c0_80 = arith.constant 0 : index
      %c0_81 = arith.constant 0 : index
      %117 = vector.load %arg8[%c0_80, %c0_81] : memref<8x128xf32, #tpu.memory_space<vmem>>, vector<8x128xf32>
      tpu.vector_store %arg8[%c0_80, %c0_81], %116 {strides = array<i32>} : memref<8x128xf32, #tpu.memory_space<vmem>>, vector<8x128xf32>,
    } else {
    }
    %c0 = arith.constant 0 : index
    %c0_1 = arith.constant 0 : index
    %c0_2 = arith.constant 0 : index
    %3 = vector.load %arg2[%c0, %c0_1, %c0_2] : memref<8x8x128xf32, #tpu.memory_space<vmem>>, vector<8x8x128xf32>
    %4 = vector.shape_cast %3 : vector<8x8x128xf32> to vector<64x128xf32>
    %c0_3 = arith.constant 0 : index
    %c0_4 = arith.constant 0 : index
    %c0_5 = arith.constant 0 : index
    %5 = vector.load %arg4[%c0_3, %c0_4, %c0_5] : memref<1x128x128xf32, #tpu.memory_space<vmem>>, vector<1x128x128xf32>
    %6 = vector.shape_cast %5 : vector<1x128x128xf32> to vector<128x128xf32>
    %cst = arith.constant dense<0.000000e+00> : vector<64x128xf32>
    %7 = tpu.matmul %4, %6, %cst {dimension_numbers = #tpu.dot_dimension_numbers<[1], [0], [0], [1], [0, 0, 1, 1], [], []>} : vector<64x128xf32>, vector<128x128xf32>, vector<64x128xf32> -> vector<64x128xf32>
    %c0_6 = arith.constant 0 : index
    %c0_7 = arith.constant 0 : index
    %c0_8 = arith.constant 0 : index
    %8 = vector.load %arg6[%c0_6, %c0_7, %c0_8] : memref<1x1x128xf32, #tpu.memory_space<vmem>>, vector<1x1x128xf32>
    %9 = vector.shape_cast %8 : vector<1x1x128xf32> to vector<1x128xf32>
    %10 = vector.broadcast %9 : vector<1x128xf32> to vector<64x128xf32>
    %11 = arith.addf %7, %10 : vector<64x128xf32>
    %12 = vector.shape_cast %11 : vector<64x128xf32> to vector<8x8x128xf32>
    %c0_9 = arith.constant 0 : index
    %c0_10 = arith.constant 0 : index
    %c0_11 = arith.constant 0 : index
    %13 = vector.load %arg9[%c0_9, %c0_10, %c0_11] : memref<8x8x128xf32, #tpu.memory_space<vmem>>, vector<8x8x128xf32>
    tpu.vector_store %arg9[%c0_9, %c0_10, %c0_11], %12 {strides = array<i32>} : memref<8x8x128xf32, #tpu.memory_space<vmem>>, vector<8x8x128xf32>,
    %c0_12 = arith.constant 0 : index
    %c0_13 = arith.constant 0 : index
    %c0_14 = arith.constant 0 : index
    %14 = vector.load %arg5[%c0_12, %c0_13, %c0_14] : memref<1x128x128xf32, #tpu.memory_space<vmem>>, vector<1x128x128xf32>
    %15 = vector.shape_cast %14 : vector<1x128x128xf32> to vector<128x128xf32>
    %c1_i32 = arith.constant 1 : i32
    %16 = arith.cmpi eq, %arg0, %c1_i32 : i32
    %c0_15 = arith.constant 0 : index
    %c0_16 = arith.constant 0 : index
    %17 = vector.load %arg8[%c0_15, %c0_16] : memref<8x128xf32, #tpu.memory_space<vmem>>, vector<8x128xf32>
    %c0_i32_17 = arith.constant 0 : i32
    %c7_i32 = arith.constant 7 : i32
    %18 = arith.subi %c7_i32, %c0_i32_17 : i32
    %19 = arith.select %16, %18, %c0_i32_17 : i32
    %20 = arith.index_cast %19 : i32 to index
    %c0_18 = arith.constant 0 : index
    %c0_19 = arith.constant 0 : index
    %21 = vector.load %arg9[%20, %c0_18, %c0_19] : memref<8x8x128xf32, #tpu.memory_space<vmem>>, vector<1x8x128xf32>
    %22 = vector.shape_cast %21 : vector<1x8x128xf32> to vector<8x128xf32>
    %cst_20 = arith.constant dense<0.000000e+00> : vector<8x128xf32>
    %23 = tpu.matmul %17, %15, %cst_20 {dimension_numbers = #tpu.dot_dimension_numbers<[1], [0], [0], [1], [0, 0, 1, 1], [], []>} : vector<8x128xf32>, vector<128x128xf32>, vector<8x128xf32> -> vector<8x128xf32>
    %24 = arith.addf %22, %23 : vector<8x128xf32>
    %25 = math.tanh %24 : vector<8x128xf32>
    %c0_21 = arith.constant 0 : index
    %26 = arith.index_cast %19 : i32 to index
    %c0_22 = arith.constant 0 : index
    %c0_23 = arith.constant 0 : index
    %27 = vector.load %arg7[%c0_21, %26, %c0_22, %c0_23] : memref<1x8x8x128xf32, #tpu.memory_space<vmem>>, vector<1x1x8x128xf32>
    %28 = vector.shape_cast %27 : vector<1x1x8x128xf32> to vector<8x128xf32>
    %29 = vector.shape_cast %25 : vector<8x128xf32> to vector<1x1x8x128xf32>
    tpu.vector_store %arg7[%c0_21, %26, %c0_22, %c0_23], %29 {strides = array<i32>} : memref<1x8x8x128xf32, #tpu.memory_space<vmem>>, vector<1x1x8x128xf32>,
    %c1_i32_24 = arith.constant 1 : i32
    %c7_i32_25 = arith.constant 7 : i32
    %30 = arith.subi %c7_i32_25, %c1_i32_24 : i32
    %31 = arith.select %16, %30, %c1_i32_24 : i32
    %32 = arith.index_cast %31 : i32 to index
    %c0_26 = arith.constant 0 : index
    %c0_27 = arith.constant 0 : index
    %33 = vector.load %arg9[%32, %c0_26, %c0_27] : memref<8x8x128xf32, #tpu.memory_space<vmem>>, vector<1x8x128xf32>
    %34 = vector.shape_cast %33 : vector<1x8x128xf32> to vector<8x128xf32>
    %cst_28 = arith.constant dense<0.000000e+00> : vector<8x128xf32>
    %35 = tpu.matmul %25, %15, %cst_28 {dimension_numbers = #tpu.dot_dimension_numbers<[1], [0], [0], [1], [0, 0, 1, 1], [], []>} : vector<8x128xf32>, vector<128x128xf32>, vector<8x128xf32> -> vector<8x128xf32>
    %36 = arith.addf %34, %35 : vector<8x128xf32>
    %37 = math.tanh %36 : vector<8x128xf32>
    %c0_29 = arith.constant 0 : index
    %38 = arith.index_cast %31 : i32 to index
    %c0_30 = arith.constant 0 : index
    %c0_31 = arith.constant 0 : index
    %39 = vector.load %arg7[%c0_29, %38, %c0_30, %c0_31] : memref<1x8x8x128xf32, #tpu.memory_space<vmem>>, vector<1x1x8x128xf32>
    %40 = vector.shape_cast %39 : vector<1x1x8x128xf32> to vector<8x128xf32>
    %41 = vector.shape_cast %37 : vector<8x128xf32> to vector<1x1x8x128xf32>
    tpu.vector_store %arg7[%c0_29, %38, %c0_30, %c0_31], %41 {strides = array<i32>} : memref<1x8x8x128xf32, #tpu.memory_space<vmem>>, vector<1x1x8x128xf32>,
    %c2_i32 = arith.constant 2 : i32
    %c7_i32_32 = arith.constant 7 : i32
    %42 = arith.subi %c7_i32_32, %c2_i32 : i32
    %43 = arith.select %16, %42, %c2_i32 : i32
    %44 = arith.index_cast %43 : i32 to index
    %c0_33 = arith.constant 0 : index
    %c0_34 = arith.constant 0 : index
    %45 = vector.load %arg9[%44, %c0_33, %c0_34] : memref<8x8x128xf32, #tpu.memory_space<vmem>>, vector<1x8x128xf32>
    %46 = vector.shape_cast %45 : vector<1x8x128xf32> to vector<8x128xf32>
    %cst_35 = arith.constant dense<0.000000e+00> : vector<8x128xf32>
    %47 = tpu.matmul %37, %15, %cst_35 {dimension_numbers = #tpu.dot_dimension_numbers<[1], [0], [0], [1], [0, 0, 1, 1], [], []>} : vector<8x128xf32>, vector<128x128xf32>, vector<8x128xf32> -> vector<8x128xf32>
    %48 = arith.addf %46, %47 : vector<8x128xf32>
    %49 = math.tanh %48 : vector<8x128xf32>
    %c0_36 = arith.constant 0 : index
    %50 = arith.index_cast %43 : i32 to index
    %c0_37 = arith.constant 0 : index
    %c0_38 = arith.constant 0 : index
    %51 = vector.load %arg7[%c0_36, %50, %c0_37, %c0_38] : memref<1x8x8x128xf32, #tpu.memory_space<vmem>>, vector<1x1x8x128xf32>
    %52 = vector.shape_cast %51 : vector<1x1x8x128xf32> to vector<8x128xf32>
    %53 = vector.shape_cast %49 : vector<8x128xf32> to vector<1x1x8x128xf32>
    tpu.vector_store %arg7[%c0_36, %50, %c0_37, %c0_38], %53 {strides = array<i32>} : memref<1x8x8x128xf32, #tpu.memory_space<vmem>>, vector<1x1x8x128xf32>,
    %c3_i32 = arith.constant 3 : i32
    %c7_i32_39 = arith.constant 7 : i32
    %54 = arith.subi %c7_i32_39, %c3_i32 : i32
    %55 = arith.select %16, %54, %c3_i32 : i32
    %56 = arith.index_cast %55 : i32 to index
    %c0_40 = arith.constant 0 : index
    %c0_41 = arith.constant 0 : index
    %57 = vector.load %arg9[%56, %c0_40, %c0_41] : memref<8x8x128xf32, #tpu.memory_space<vmem>>, vector<1x8x128xf32>
    %58 = vector.shape_cast %57 : vector<1x8x128xf32> to vector<8x128xf32>
    %cst_42 = arith.constant dense<0.000000e+00> : vector<8x128xf32>
    %59 = tpu.matmul %49, %15, %cst_42 {dimension_numbers = #tpu.dot_dimension_numbers<[1], [0], [0], [1], [0, 0, 1, 1], [], []>} : vector<8x128xf32>, vector<128x128xf32>, vector<8x128xf32> -> vector<8x128xf32>
    %60 = arith.addf %58, %59 : vector<8x128xf32>
    %61 = math.tanh %60 : vector<8x128xf32>
    %c0_43 = arith.constant 0 : index
    %62 = arith.index_cast %55 : i32 to index
    %c0_44 = arith.constant 0 : index
    %c0_45 = arith.constant 0 : index
    %63 = vector.load %arg7[%c0_43, %62, %c0_44, %c0_45] : memref<1x8x8x128xf32, #tpu.memory_space<vmem>>, vector<1x1x8x128xf32>
    %64 = vector.shape_cast %63 : vector<1x1x8x128xf32> to vector<8x128xf32>
    %65 = vector.shape_cast %61 : vector<8x128xf32> to vector<1x1x8x128xf32>
    tpu.vector_store %arg7[%c0_43, %62, %c0_44, %c0_45], %65 {strides = array<i32>} : memref<1x8x8x128xf32, #tpu.memory_space<vmem>>, vector<1x1x8x128xf32>,
    %c4_i32 = arith.constant 4 : i32
    %c7_i32_46 = arith.constant 7 : i32
    %66 = arith.subi %c7_i32_46, %c4_i32 : i32
    %67 = arith.select %16, %66, %c4_i32 : i32
    %68 = arith.index_cast %67 : i32 to index
    %c0_47 = arith.constant 0 : index
    %c0_48 = arith.constant 0 : index
    %69 = vector.load %arg9[%68, %c0_47, %c0_48] : memref<8x8x128xf32, #tpu.memory_space<vmem>>, vector<1x8x128xf32>
    %70 = vector.shape_cast %69 : vector<1x8x128xf32> to vector<8x128xf32>
    %cst_49 = arith.constant dense<0.000000e+00> : vector<8x128xf32>
    %71 = tpu.matmul %61, %15, %cst_49 {dimension_numbers = #tpu.dot_dimension_numbers<[1], [0], [0], [1], [0, 0, 1, 1], [], []>} : vector<8x128xf32>, vector<128x128xf32>, vector<8x128xf32> -> vector<8x128xf32>
    %72 = arith.addf %70, %71 : vector<8x128xf32>
    %73 = math.tanh %72 : vector<8x128xf32>
    %c0_50 = arith.constant 0 : index
    %74 = arith.index_cast %67 : i32 to index
    %c0_51 = arith.constant 0 : index
    %c0_52 = arith.constant 0 : index
    %75 = vector.load %arg7[%c0_50, %74, %c0_51, %c0_52] : memref<1x8x8x128xf32, #tpu.memory_space<vmem>>, vector<1x1x8x128xf32>
    %76 = vector.shape_cast %75 : vector<1x1x8x128xf32> to vector<8x128xf32>
    %77 = vector.shape_cast %73 : vector<8x128xf32> to vector<1x1x8x128xf32>
    tpu.vector_store %arg7[%c0_50, %74, %c0_51, %c0_52], %77 {strides = array<i32>} : memref<1x8x8x128xf32, #tpu.memory_space<vmem>>, vector<1x1x8x128xf32>,
    %c5_i32 = arith.constant 5 : i32
    %c7_i32_53 = arith.constant 7 : i32
    %78 = arith.subi %c7_i32_53, %c5_i32 : i32
    %79 = arith.select %16, %78, %c5_i32 : i32
    %80 = arith.index_cast %79 : i32 to index
    %c0_54 = arith.constant 0 : index
    %c0_55 = arith.constant 0 : index
    %81 = vector.load %arg9[%80, %c0_54, %c0_55] : memref<8x8x128xf32, #tpu.memory_space<vmem>>, vector<1x8x128xf32>
    %82 = vector.shape_cast %81 : vector<1x8x128xf32> to vector<8x128xf32>
    %cst_56 = arith.constant dense<0.000000e+00> : vector<8x128xf32>
    %83 = tpu.matmul %73, %15, %cst_56 {dimension_numbers = #tpu.dot_dimension_numbers<[1], [0], [0], [1], [0, 0, 1, 1], [], []>} : vector<8x128xf32>, vector<128x128xf32>, vector<8x128xf32> -> vector<8x128xf32>
    %84 = arith.addf %82, %83 : vector<8x128xf32>
    %85 = math.tanh %84 : vector<8x128xf32>
    %c0_57 = arith.constant 0 : index
    %86 = arith.index_cast %79 : i32 to index
    %c0_58 = arith.constant 0 : index
    %c0_59 = arith.constant 0 : index
    %87 = vector.load %arg7[%c0_57, %86, %c0_58, %c0_59] : memref<1x8x8x128xf32, #tpu.memory_space<vmem>>, vector<1x1x8x128xf32>
    %88 = vector.shape_cast %87 : vector<1x1x8x128xf32> to vector<8x128xf32>
    %89 = vector.shape_cast %85 : vector<8x128xf32> to vector<1x1x8x128xf32>
    tpu.vector_store %arg7[%c0_57, %86, %c0_58, %c0_59], %89 {strides = array<i32>} : memref<1x8x8x128xf32, #tpu.memory_space<vmem>>, vector<1x1x8x128xf32>,
    %c6_i32 = arith.constant 6 : i32
    %c7_i32_60 = arith.constant 7 : i32
    %90 = arith.subi %c7_i32_60, %c6_i32 : i32
    %91 = arith.select %16, %90, %c6_i32 : i32
    %92 = arith.index_cast %91 : i32 to index
    %c0_61 = arith.constant 0 : index
    %c0_62 = arith.constant 0 : index
    %93 = vector.load %arg9[%92, %c0_61, %c0_62] : memref<8x8x128xf32, #tpu.memory_space<vmem>>, vector<1x8x128xf32>
    %94 = vector.shape_cast %93 : vector<1x8x128xf32> to vector<8x128xf32>
    %cst_63 = arith.constant dense<0.000000e+00> : vector<8x128xf32>
    %95 = tpu.matmul %85, %15, %cst_63 {dimension_numbers = #tpu.dot_dimension_numbers<[1], [0], [0], [1], [0, 0, 1, 1], [], []>} : vector<8x128xf32>, vector<128x128xf32>, vector<8x128xf32> -> vector<8x128xf32>
    %96 = arith.addf %94, %95 : vector<8x128xf32>
    %97 = math.tanh %96 : vector<8x128xf32>
    %c0_64 = arith.constant 0 : index
    %98 = arith.index_cast %91 : i32 to index
    %c0_65 = arith.constant 0 : index
    %c0_66 = arith.constant 0 : index
    %99 = vector.load %arg7[%c0_64, %98, %c0_65, %c0_66] : memref<1x8x8x128xf32, #tpu.memory_space<vmem>>, vector<1x1x8x128xf32>
    %100 = vector.shape_cast %99 : vector<1x1x8x128xf32> to vector<8x128xf32>
    %101 = vector.shape_cast %97 : vector<8x128xf32> to vector<1x1x8x128xf32>
    tpu.vector_store %arg7[%c0_64, %98, %c0_65, %c0_66], %101 {strides = array<i32>} : memref<1x8x8x128xf32, #tpu.memory_space<vmem>>, vector<1x1x8x128xf32>,
    %c7_i32_67 = arith.constant 7 : i32
    %c7_i32_68 = arith.constant 7 : i32
    %102 = arith.subi %c7_i32_68, %c7_i32_67 : i32
    %103 = arith.select %16, %102, %c7_i32_67 : i32
    %104 = arith.index_cast %103 : i32 to index
    %c0_69 = arith.constant 0 : index
    %c0_70 = arith.constant 0 : index
    %105 = vector.load %arg9[%104, %c0_69, %c0_70] : memref<8x8x128xf32, #tpu.memory_space<vmem>>, vector<1x8x128xf32>
    %106 = vector.shape_cast %105 : vector<1x8x128xf32> to vector<8x128xf32>
    %cst_71 = arith.constant dense<0.000000e+00> : vector<8x128xf32>
    %107 = tpu.matmul %97, %15, %cst_71 {dimension_numbers = #tpu.dot_dimension_numbers<[1], [0], [0], [1], [0, 0, 1, 1], [], []>} : vector<8x128xf32>, vector<128x128xf32>, vector<8x128xf32> -> vector<8x128xf32>
    %108 = arith.addf %106, %107 : vector<8x128xf32>
    %109 = math.tanh %108 : vector<8x128xf32>
    %c0_72 = arith.constant 0 : index
    %110 = arith.index_cast %103 : i32 to index
    %c0_73 = arith.constant 0 : index
    %c0_74 = arith.constant 0 : index
    %111 = vector.load %arg7[%c0_72, %110, %c0_73, %c0_74] : memref<1x8x8x128xf32, #tpu.memory_space<vmem>>, vector<1x1x8x128xf32>
    %112 = vector.shape_cast %111 : vector<1x1x8x128xf32> to vector<8x128xf32>
    %113 = vector.shape_cast %109 : vector<8x128xf32> to vector<1x1x8x128xf32>
    tpu.vector_store %arg7[%c0_72, %110, %c0_73, %c0_74], %113 {strides = array<i32>} : memref<1x8x8x128xf32, #tpu.memory_space<vmem>>, vector<1x1x8x128xf32>,
    %c8_i32 = arith.constant 8 : i32
    %c0_75 = arith.constant 0 : index
    %c0_76 = arith.constant 0 : index
    %114 = vector.load %arg8[%c0_75, %c0_76] : memref<8x128xf32, #tpu.memory_space<vmem>>, vector<8x128xf32>
    tpu.vector_store %arg8[%c0_75, %c0_76], %109 {strides = array<i32>} : memref<8x128xf32, #tpu.memory_space<vmem>>, vector<8x128xf32>,
    return
  }
  func.func @transform_0(%arg0: i32, %arg1: i32) -> (i32, i32, i32) {
    %c0_i32 = arith.constant 0 : i32
    %0 = arith.cmpi eq, %arg0, %c0_i32 : i32
    %c0_i32_0 = arith.constant 0 : i32
    %1 = arith.subi %c0_i32_0, %arg1 : i32
    %2 = arith.select %0, %arg1, %1 : i32
    %c0_i32_1 = arith.constant 0 : i32
    %c0_i32_2 = arith.constant 0 : i32
    %c0_i32_3 = arith.constant 0 : i32
    return %2, %c0_i32_1, %c0_i32_2 : i32, i32, i32
  }
  func.func @transform_1(%arg0: i32, %arg1: i32) -> (i32, i32, i32) {
    %c0_i32 = arith.constant 0 : i32
    %c0_i32_0 = arith.constant 0 : i32
    %c0_i32_1 = arith.constant 0 : i32
    return %arg0, %c0_i32, %c0_i32_0 : i32, i32, i32
  }
  func.func @transform_2(%arg0: i32, %arg1: i32) -> (i32, i32, i32) {
    %c0_i32 = arith.constant 0 : i32
    %c0_i32_0 = arith.constant 0 : i32
    %c0_i32_1 = arith.constant 0 : i32
    return %arg0, %c0_i32, %c0_i32_0 : i32, i32, i32
  }
  func.func @transform_3(%arg0: i32, %arg1: i32) -> (i32, i32, i32) {
    %c0_i32 = arith.constant 0 : i32
    %c0_i32_0 = arith.constant 0 : i32
    %c0_i32_1 = arith.constant 0 : i32
    return %arg0, %c0_i32, %c0_i32_0 : i32, i32, i32
  }
  func.func @transform_4(%arg0: i32, %arg1: i32) -> (i32, i32, i32) {
    %c0_i32 = arith.constant 0 : i32
    %c0_i32_0 = arith.constant 0 : i32
    %c0_i32_1 = arith.constant 0 : i32
    return %arg0, %c0_i32, %c0_i32_0 : i32, i32, i32
  }
  func.func @transform_5(%arg0: i32, %arg1: i32) -> (i32, i32, i32, i32) {
    %c0_i32 = arith.constant 0 : i32
    %0 = arith.cmpi eq, %arg0, %c0_i32 : i32
    %c0_i32_0 = arith.constant 0 : i32
    %1 = arith.subi %c0_i32_0, %arg1 : i32
    %2 = arith.select %0, %arg1, %1 : i32
    %c0_i32_1 = arith.constant 0 : i32
    %c0_i32_2 = arith.constant 0 : i32
    %c0_i32_3 = arith.constant 0 : i32
    return %arg0, %2, %c0_i32_1, %c0_i32_2 : i32, i32, i32, i32
  }
}

</mosaic_0001>

<llo_original>
// kernel: tpu_custom_call.1
$region0: #{tpu_custom_call.1}
  #allocation0 [shape = 'u32[]', space=smem, size = 0x4, offset = 0x4, fixed_abs, tag = 'smem constant byte address 0x4 - core index']
  #allocation1 [shape = 'u32[144,128]{1,0:T(1,128)}', space=vmem, size = 0x12000, scoped, tag = 'internal scratch']
  #allocation2 [shape = 'f32[8,128]{1,0:T(8,128)}', space=vmem, size = 0x1000, scoped, tag = 'scratch operand']
  #allocation3 [shape = 'f32[8,8,128]{2,1,0:T(8,128)}', space=vmem, size = 0x8000, scoped, tag = 'scratch operand']
  %s0 = inlined_call_operand.hbm [shape: f32[8,8,128], index: 0, kind: input, shape index: {}]
  %s1 = inlined_call_operand.hbm [shape: f32[2,8,128], index: 1, kind: input, shape index: {}]
  %s2 = inlined_call_operand.hbm [shape: f32[2,128,128], index: 2, kind: input, shape index: {}]
  %s3 = inlined_call_operand.hbm [shape: f32[2,128,128], index: 3, kind: input, shape index: {}]
  %s4 = inlined_call_operand.vmem [shape: f32[2,1,128], index: 4, kind: input, shape index: {}]
  %s5 = inlined_call_operand.hbm [shape: f32[2,8,8,128], index: 5, kind: output, shape index: {}]
  %s6 = sld [smem:[#allocation0]]
  $region73: #{tpu_custom_call.1} parent=0
    _
  %s8 = ssub.s32 1, %s6
  %s9 = scalar_select 0, %s8, %s6
  $region1: #{tpu_custom_call.1} parent=0
    #allocation4 [shape = 'u8[65536]{0}', space=vmem, size = 0x10000, scoped, tag = 'input window, operand 0']
    #allocation5 [shape = 's32[2]{0}', space=sflag, size = 0x8, scoped, tag = 'scoped memory for tpu_custom_call.1']
    #allocation6 [shape = 's32[2]{0}', space=sflag, size = 0x8, scoped, tag = 'scoped memory for tpu_custom_call.1']
    #allocation7 [shape = 'u8[8192]{0}', space=vmem, size = 0x2000, scoped, tag = 'input window, operand 1']
    #allocation8 [shape = 's32[2]{0}', space=sflag, size = 0x8, scoped, tag = 'scoped memory for tpu_custom_call.1']
    #allocation9 [shape = 'u8[131072]{0}', space=vmem, size = 0x20000, scoped, tag = 'input window, operand 2']
    #allocation10 [shape = 'u8[131072]{0}', space=vmem, size = 0x20000, scoped, tag = 'input window, operand 3']
    #allocation11 [shape = 's32[2]{0}', space=sflag, size = 0x8, scoped, tag = 'scoped memory for tpu_custom_call.1']
    #allocation12 [shape = 'u8[65536]{0}', space=vmem, size = 0x10000, scoped, tag = 'output window, operand 0']
    %10 = vsyncpa [#allocation5], 0
    %s11 = scalar_lea.sflag [#allocation5], 1
    %12 = vsyncpa %s11, 0
    %13 = vsyncpa [#allocation8], 0
    %s14 = scalar_lea.sflag [#allocation8], 1
    %15 = vsyncpa %s14, 0
    %16 = vsyncpa [#allocation11], 0
    %s17 = scalar_lea.sflag [#allocation11], 1
    %18 = vsyncpa %s17, 0
    %19 = vsyncpa [#allocation6], 0
    %s20 = scalar_lea.sflag [#allocation6], 1
    %21 = vsyncpa %s20, 0
    loop: start=0, step=1, limit=4
    $region2: #{tpu_custom_call.1} parent=1 // loop_pre_header
      _
    $region3: #{tpu_custom_call.1} parent=1 // loop_header
      %s23 = sphi 0, %s27
      %p24 = scmp.ge.s32.totalorder %s23, 4
      %s30 = sphi 0, %s42
      %s31 = sphi 0, %s38
      %s32 = sphi 0, %s30
      %s33 = sphi 0, %s31
      %s34 = sphi 0, %s32
      %s35 = sphi 0, %s33
      %s51 = sphi 0, %s53
      %s54 = sphi 0, %s51
      %s55 = sphi 0, %s54
      %s71 = sphi 0, %s55
      %s77 = sphi 0, %s79
      %s80 = sphi 0, %s77
      %s81 = sphi 0, %s80
      %s97 = sphi 0, %s81
      %s103 = sphi 0, %s105
      %s106 = sphi 0, %s103
      %s107 = sphi 0, %s106
      %s123 = sphi 0, %s107
      %s129 = sphi 0, %s131
      %s132 = sphi 0, %s129
      %s133 = sphi 0, %s132
      %s149 = sphi 0, %s133
      %s155 = sphi 0, %s157
      %s158 = sphi 0, %s155
      %s159 = sphi 0, %s158
      %s175 = sphi 0, %s159
      %s189 = sphi 0, %s191
      %s192 = sphi 0, %s189
      %s193 = sphi 0, %s192
      %s209 = sphi 0, %s193
    $region4: #{tpu_custom_call.1} parent=1 // loop_header_branch
      %26 = sbr.rel (%p24) target = $region8
    $region5: #{tpu_custom_call.1} parent=1 // loop_body
      %s28 = ssub.s32 %s23, 1
      %s29 = ssub.s32 %s23, 2
      %s36 = sadd.s32 1, %s31
      %p37 = scmp.ge.s32.totalorder %s36, 1
      %s38 = scalar_select %p37, 0, %s36
      %s39 = sadd.s32 1, %s30
      %s40 = scalar_select %p37, %s39, %s30
      %p41 = scmp.ge.s32.totalorder %s40, 2
      %s42 = scalar_select %p41, 0, %s40
      %p43 = scmp.eq.s32.totalorder %s30, 0
      %s44 = ssub.s32 0, %s31
      %s45 = scalar_select %p43, %s31, %s44
      %p46 = scmp.eq.s32.totalorder %s42, 0
      %s47 = ssub.s32 0, %s38
      %s48 = scalar_select %p46, %s38, %s47
      %s49 = ssub.s32 %s45, %s48
      %p50 = scmp.eq.s32.totalorder %s49, 0
      %s52 = sadd.s32 %s51, 1
      %s53 = scalar_select %p50, %s51, %s52
      %p56 = pneg %p50
      %p57 = scmp.eq.s32.totalorder %s23, 1
      %p58 = por %p56, %p57
      %p59 = scmp.ne.s32.totalorder %s51, %s54
      %p60 = scmp.eq.s32.totalorder %s23, 0
      %p61 = por %p59, %p60
      %p62 = scmp.ne.s32.totalorder %s51, %s54
      %p63 = scmp.eq.s32.totalorder %s28, 1
      %p64 = por %p62, %p63
      %p65 = scmp.ne.s32.totalorder %s54, %s55
      %p66 = scmp.eq.s32.totalorder %s28, 0
      %p67 = por %p65, %p66
      %p68 = scmp.ne.s32.totalorder %s54, %s55
      %p69 = scmp.eq.s32.totalorder %s29, 1
      %p70 = por %p68, %p69
      %p72 = scmp.ne.s32.totalorder %s55, %s71
      %p73 = scmp.eq.s32.totalorder %s29, 0
      %p74 = por %p72, %p73
      %s75 = ssub.s32 %s30, %s42
      %p76 = scmp.eq.s32.totalorder %s75, 0
      %s78 = sadd.s32 %s77, 1
      %s79 = scalar_select %p76, %s77, %s78
      %p82 = pneg %p76
      %p83 = scmp.eq.s32.totalorder %s23, 1
      %p84 = por %p82, %p83
      %p85 = scmp.ne.s32.totalorder %s77, %s80
      %p86 = scmp.eq.s32.totalorder %s23, 0
      %p87 = por %p85, %p86
      %p88 = scmp.ne.s32.totalorder %s77, %s80
      %p89 = scmp.eq.s32.totalorder %s28, 1
      %p90 = por %p88, %p89
      %p91 = scmp.ne.s32.totalorder %s80, %s81
      %p92 = scmp.eq.s32.totalorder %s28, 0
      %p93 = por %p91, %p92
      %p94 = scmp.ne.s32.totalorder %s80, %s81
      %p95 = scmp.eq.s32.totalorder %s29, 1
      %p96 = por %p94, %p95
      %p98 = scmp.ne.s32.totalorder %s81, %s97
      %p99 = scmp.eq.s32.totalorder %s29, 0
      %p100 = por %p98, %p99
      %s101 = ssub.s32 %s30, %s42
      %p102 = scmp.eq.s32.totalorder %s101, 0
      %s104 = sadd.s32 %s103, 1
      %s105 = scalar_select %p102, %s103, %s104
      %p108 = pneg %p102
      %p109 = scmp.eq.s32.totalorder %s23, 1
      %p110 = por %p108, %p109
      %p111 = scmp.ne.s32.totalorder %s103, %s106
      %p112 = scmp.eq.s32.totalorder %s23, 0
      %p113 = por %p111, %p112
      %p114 = scmp.ne.s32.totalorder %s103, %s106
      %p115 = scmp.eq.s32.totalorder %s28, 1
      %p116 = por %p114, %p115
      %p117 = scmp.ne.s32.totalorder %s106, %s107
      %p118 = scmp.eq.s32.totalorder %s28, 0
      %p119 = por %p117, %p118
      %p120 = scmp.ne.s32.totalorder %s106, %s107
      %p121 = scmp.eq.s32.totalorder %s29, 1
      %p122 = por %p120, %p121
      %p124 = scmp.ne.s32.totalorder %s107, %s123
      %p125 = scmp.eq.s32.totalorder %s29, 0
      %p126 = por %p124, %p125
      %s127 = ssub.s32 %s30, %s42
      %p128 = scmp.eq.s32.totalorder %s127, 0
      %s130 = sadd.s32 %s129, 1
      %s131 = scalar_select %p128, %s129, %s130
      %p134 = pneg %p128
      %p135 = scmp.eq.s32.totalorder %s23, 1
      %p136 = por %p134, %p135
      %p137 = scmp.ne.s32.totalorder %s129, %s132
      %p138 = scmp.eq.s32.totalorder %s23, 0
      %p139 = por %p137, %p138
      %p140 = scmp.ne.s32.totalorder %s129, %s132
      %p141 = scmp.eq.s32.totalorder %s28, 1
      %p142 = por %p140, %p141
      %p143 = scmp.ne.s32.totalorder %s132, %s133
      %p144 = scmp.eq.s32.totalorder %s28, 0
      %p145 = por %p143, %p144
      %p146 = scmp.ne.s32.totalorder %s132, %s133
      %p147 = scmp.eq.s32.totalorder %s29, 1
      %p148 = por %p146, %p147
      %p150 = scmp.ne.s32.totalorder %s133, %s149
      %p151 = scmp.eq.s32.totalorder %s29, 0
      %p152 = por %p150, %p151
      %s153 = ssub.s32 %s30, %s42
      %p154 = scmp.eq.s32.totalorder %s153, 0
      %s156 = sadd.s32 %s155, 1
      %s157 = scalar_select %p154, %s155, %s156
      %p160 = pneg %p154
      %p161 = scmp.eq.s32.totalorder %s23, 1
      %p162 = por %p160, %p161
      %p163 = scmp.ne.s32.totalorder %s155, %s158
      %p164 = scmp.eq.s32.totalorder %s23, 0
      %p165 = por %p163, %p164
      %p166 = scmp.ne.s32.totalorder %s155, %s158
      %p167 = scmp.eq.s32.totalorder %s28, 1
      %p168 = por %p166, %p167
      %p169 = scmp.ne.s32.totalorder %s158, %s159
      %p170 = scmp.eq.s32.totalorder %s28, 0
      %p171 = por %p169, %p170
      %p172 = scmp.ne.s32.totalorder %s158, %s159
      %p173 = scmp.eq.s32.totalorder %s29, 1
      %p174 = por %p172, %p173
      %p176 = scmp.ne.s32.totalorder %s159, %s175
      %p177 = scmp.eq.s32.totalorder %s29, 0
      %p178 = por %p176, %p177
      %p179 = scmp.eq.s32.totalorder %s30, 0
      %s180 = ssub.s32 0, %s31
      %s181 = scalar_select %p179, %s31, %s180
      %p182 = scmp.eq.s32.totalorder %s42, 0
      %s183 = ssub.s32 0, %s38
      %s184 = scalar_select %p182, %s38, %s183
      %s185 = ssub.s32 %s30, %s42
      %s186 = ssub.s32 %s181, %s184
      %s187 = sor.u32 %s185, %s186
      %p188 = scmp.eq.s32.totalorder %s187, 0
      %s190 = sadd.s32 %s189, 1
      %s191 = scalar_select %p188, %s189, %s190
      %p194 = pneg %p188
      %p195 = scmp.eq.s32.totalorder %s23, 1
      %p196 = por %p194, %p195
      %p197 = scmp.ne.s32.totalorder %s189, %s192
      %p198 = scmp.eq.s32.totalorder %s23, 0
      %p199 = por %p197, %p198
      %p200 = scmp.ne.s32.totalorder %s189, %s192
      %p201 = scmp.eq.s32.totalorder %s28, 1
      %p202 = por %p200, %p201
      %p203 = scmp.ne.s32.totalorder %s192, %s193
      %p204 = scmp.eq.s32.totalorder %s28, 0
      %p205 = por %p203, %p204
      %p206 = scmp.ne.s32.totalorder %s192, %s193
      %p207 = scmp.eq.s32.totalorder %s29, 1
      %p208 = por %p206, %p207
      %p210 = scmp.ne.s32.totalorder %s193, %s209
      %p211 = scmp.eq.s32.totalorder %s29, 0
      %p212 = por %p210, %p211
      %p213 = scmp.le.s32.totalorder 1, %s23
      %p214 = scmp.lt.s32.totalorder %s23, 3
      %p215 = pnand %p213, %p214
      %p216 = pneg %p215
      // Predicated region
      $region9: #{tpu_custom_call.1} parent=5 // pred_check
        _
      $region10: #{tpu_custom_call.1} parent=5 // pred_check_branch
        %218 = sbr.rel (%p215) target = $region12
      $region11: #{tpu_custom_call.1} parent=5 // pred_region
        %s219 = ssub.s32 %s23, 1
      $region12: #{tpu_custom_call.1} parent=5 // pred_fallthru
        _
      %p220 = scmp.lt.s32.totalorder %s23, 2
      // Predicated region
      $region13: #{tpu_custom_call.1} parent=5 // pred_check
        %p221 = pneg %p220
      $region14: #{tpu_custom_call.1} parent=5 // pred_check_branch
        %223 = sbr.rel (%p221) target = $region16
      $region15: #{tpu_custom_call.1} parent=5 // pred_region
        // Predicated region
        $region17: #{tpu_custom_call.1} parent=15 // pred_check
          %p224 = pneg %p61
        $region18: #{tpu_custom_call.1} parent=15 // pred_check_branch
          %226 = sbr.rel (%p224) target = $region20
        $region19: #{tpu_custom_call.1} parent=15 // pred_region
          %s227 = sand.u32 %s51, 1
          %s228 = scalar_lea.sflag [#allocation5], %s227
          %s229 = sand.u32 %s51, 1
          %s230 = smul.addr %s229, 64
          %s231 = scalar_lea.vmem [#allocation4], %s230
          %p232 = scmp.eq.s32.totalorder %s30, 0
          %s233 = ssub.s32 0, %s31
          %s234 = scalar_select %p232, %s31, %s233
          %s235 = smul.u32 8, %s234
          %s237 = ssub.s32 1024, 1024
          %238 = vsyncadd %s228, %s237
          %s239 = smul.addr %s235, 128
          %s240 = scalar_lea.hbm %s0, %s239
          %s241 = sshll.u32 %s231, 4
          %s242 = int_to_ptr.vmem [resolvable:$true] %s241
          %247 = dma.hbm_to_vmem [thread:$0]  %s240, 1024, %s242, %s228, 128, 128, 8
        $region20: #{tpu_custom_call.1} parent=15 // pred_fallthru
          _
        // Predicated region
        $region21: #{tpu_custom_call.1} parent=15 // pred_check
          %p248 = pneg %p87
        $region22: #{tpu_custom_call.1} parent=15 // pred_check_branch
          %250 = sbr.rel (%p248) target = $region24
        $region23: #{tpu_custom_call.1} parent=15 // pred_region
          %s251 = sand.u32 %s23, 1
          %s252 = scalar_lea.sflag [#allocation8], %s251
          %s253 = sand.u32 %s77, 1
          %s254 = smul.addr %s253, 8
          %s255 = scalar_lea.vmem [#allocation7], %s254
          %s257 = ssub.s32 128, 128
          %258 = vsyncadd %s252, %s257
          %s259 = smul.addr %s30, 128
          %s260 = scalar_lea.hbm %s1, %s259
          %s262 = sshll.u32 %s255, 4
          %s263 = int_to_ptr.vmem [resolvable:$true] %s262
          %265 = dma.hbm_to_vmem [thread:$0]  %s260, 128, %s263, %s252
        $region24: #{tpu_custom_call.1} parent=15 // pred_fallthru
          _
        // Predicated region
        $region25: #{tpu_custom_call.1} parent=15 // pred_check
          %p266 = pneg %p113
        $region26: #{tpu_custom_call.1} parent=15 // pred_check_branch
          %268 = sbr.rel (%p266) target = $region28
        $region27: #{tpu_custom_call.1} parent=15 // pred_region
          %s269 = sand.u32 %s23, 1
          %s270 = scalar_lea.sflag [#allocation8], %s269
          %s271 = sand.u32 %s103, 1
          %s272 = smul.addr %s271, 128
          %s273 = scalar_lea.vmem [#allocation9], %s272
          %s275 = ssub.s32 2048, 2048
          %276 = vsyncadd %s270, %s275
          %s277 = smul.addr %s30, 16
          %s278 = smul.addr %s277, 128
          %s279 = scalar_lea.hbm %s2, %s278
          %s280 = sshll.u32 %s273, 4
          %s281 = int_to_ptr.vmem [resolvable:$true] %s280
          %286 = dma.hbm_to_vmem [thread:$0]  %s279, 2048, %s281, %s270, 128, 128, 8
        $region28: #{tpu_custom_call.1} parent=15 // pred_fallthru
          _
        // Predicated region
        $region29: #{tpu_custom_call.1} parent=15 // pred_check
          %p287 = pneg %p139
        $region30: #{tpu_custom_call.1} parent=15 // pred_check_branch
          %289 = sbr.rel (%p287) target = $region32
        $region31: #{tpu_custom_call.1} parent=15 // pred_region
          %s290 = sand.u32 %s129, 1
          %s291 = scalar_lea.sflag [#allocation11], %s290
          %s292 = sand.u32 %s129, 1
          %s293 = smul.addr %s292, 128
          %s294 = scalar_lea.vmem [#allocation10], %s293
          %s296 = ssub.s32 2048, 2048
          %297 = vsyncadd %s291, %s296
          %s298 = smul.addr %s30, 16
          %s299 = smul.addr %s298, 128
          %s300 = scalar_lea.hbm %s3, %s299
          %s301 = sshll.u32 %s294, 4
          %s302 = int_to_ptr.vmem [resolvable:$true] %s301
          %307 = dma.hbm_to_vmem [thread:$0]  %s300, 2048, %s302, %s291, 128, 128, 8
        $region32: #{tpu_custom_call.1} parent=15 // pred_fallthru
          _
        // Predicated region
        $region33: #{tpu_custom_call.1} parent=15 // pred_check
          %p308 = pneg %p165
        $region34: #{tpu_custom_call.1} parent=15 // pred_check_branch
          %310 = sbr.rel (%p308) target = $region36
        $region35: #{tpu_custom_call.1} parent=15 // pred_region
          %p311 = scmp.lt.s32.totalorder %s30, 1
          %s312 = scalar_select %p311, %s30, 1
          %s313 = scalar_lea.vmem %s4, %s312
        $region36: #{tpu_custom_call.1} parent=15 // pred_fallthru
          _
      $region16: #{tpu_custom_call.1} parent=5 // pred_fallthru
        _
      %p314 = scmp.le.s32.totalorder 1, %s23
      %p315 = scmp.lt.s32.totalorder %s23, 3
      %p316 = pnand %p314, %p315
      %p317 = pneg %p316
      // Predicated region
      $region37: #{tpu_custom_call.1} parent=5 // pred_check
        _
      $region38: #{tpu_custom_call.1} parent=5 // pred_check_branch
        %319 = sbr.rel (%p316) target = $region40
      $region39: #{tpu_custom_call.1} parent=5 // pred_region
        %s320 = ssub.s32 %s23, 1
        %s321 = sand.u32 %s54, 1
        %s322 = scalar_lea.sflag [#allocation5], %s321
        %s323 = sand.u32 %s54, 1
        %s324 = smul.addr %s323, 64
        %s325 = scalar_lea.vmem [#allocation4], %s324
        // Predicated region
        $region41: #{tpu_custom_call.1} parent=39 // pred_check
          %p326 = pneg %p67
        $region42: #{tpu_custom_call.1} parent=39 // pred_check_branch
          %328 = sbr.rel (%p326) target = $region44
        $region43: #{tpu_custom_call.1} parent=39 // pred_region
          %329 = dma.done %s322, 1024
        $region44: #{tpu_custom_call.1} parent=39 // pred_fallthru
          _
        %s330 = sand.u32 %s28, 1
        %s331 = scalar_lea.sflag [#allocation8], %s330
        %s332 = sand.u32 %s80, 1
        %s333 = smul.addr %s332, 8
        %s334 = scalar_lea.vmem [#allocation7], %s333
        // Predicated region
        $region45: #{tpu_custom_call.1} parent=39 // pred_check
          %p335 = pneg %p93
        $region46: #{tpu_custom_call.1} parent=39 // pred_check_branch
          %337 = sbr.rel (%p335) target = $region48
        $region47: #{tpu_custom_call.1} parent=39 // pred_region
          %338 = dma.done %s331, 128
        $region48: #{tpu_custom_call.1} parent=39 // pred_fallthru
          _
        %s339 = sand.u32 %s28, 1
        %s340 = scalar_lea.sflag [#allocation8], %s339
        %s341 = sand.u32 %s106, 1
        %s342 = smul.addr %s341, 128
        %s343 = scalar_lea.vmem [#allocation9], %s342
        // Predicated region
        $region49: #{tpu_custom_call.1} parent=39 // pred_check
          %p344 = pneg %p119
        $region50: #{tpu_custom_call.1} parent=39 // pred_check_branch
          %346 = sbr.rel (%p344) target = $region52
        $region51: #{tpu_custom_call.1} parent=39 // pred_region
          %347 = dma.done %s340, 2048
        $region52: #{tpu_custom_call.1} parent=39 // pred_fallthru
          _
        %s348 = sand.u32 %s132, 1
        %s349 = scalar_lea.sflag [#allocation11], %s348
        %s350 = sand.u32 %s132, 1
        %s351 = smul.addr %s350, 128
        %s352 = scalar_lea.vmem [#allocation10], %s351
        // Predicated region
        $region53: #{tpu_custom_call.1} parent=39 // pred_check
          %p353 = pneg %p145
        $region54: #{tpu_custom_call.1} parent=39 // pred_check_branch
          %355 = sbr.rel (%p353) target = $region56
        $region55: #{tpu_custom_call.1} parent=39 // pred_region
          %356 = dma.done %s349, 2048
        $region56: #{tpu_custom_call.1} parent=39 // pred_fallthru
          _
        %s357 = sand.u32 %s54, 1
        %s358 = scalar_lea.sflag [#allocation5], %s357
        %s359 = sand.u32 %s54, 1
        %s360 = smul.addr %s359, 64
        %s361 = scalar_lea.vmem [#allocation4], %s360
        %p362 = pneg %p67
        %p363 = pneg %p64
        %s364 = sand.u32 %s28, 1
        %s365 = scalar_lea.sflag [#allocation8], %s364
        %s366 = sand.u32 %s80, 1
        %s367 = smul.addr %s366, 8
        %s368 = scalar_lea.vmem [#allocation7], %s367
        %p369 = pneg %p93
        %p370 = pneg %p90
        %s371 = sand.u32 %s28, 1
        %s372 = scalar_lea.sflag [#allocation8], %s371
        %s373 = sand.u32 %s106, 1
        %s374 = smul.addr %s373, 128
        %s375 = scalar_lea.vmem [#allocation9], %s374
        %p376 = pneg %p119
        %p377 = pneg %p116
        %s378 = sand.u32 %s132, 1
        %s379 = scalar_lea.sflag [#allocation11], %s378
        %s380 = sand.u32 %s132, 1
        %s381 = smul.addr %s380, 128
        %s382 = scalar_lea.vmem [#allocation10], %s381
        %p383 = pneg %p145
        %p384 = pneg %p142
        %p385 = scmp.lt.s32.totalorder %s32, 1
        %s386 = scalar_select %p385, %s32, 1
        %s387 = scalar_lea.vmem %s4, %s386
        %p388 = pneg %p171
        %p389 = pneg %p168
        %p390 = pneg %p205
        %p391 = pneg %p202
        %s392 = sand.u32 %s192, 1
        %s393 = scalar_lea.sflag [#allocation6], %s392
        %s394 = sand.u32 %s192, 1
        %s395 = smul.addr %s394, 64
        %s396 = scalar_lea.vmem [#allocation12], %s395
        %p397 = scmp.eq.s32.totalorder %s32, 0
        %s398 = ssub.s32 0, %s33
        %s399 = scalar_select %p397, %s33, %s398
        %s400 = smul.u32 8, %s399
        %p401 = scmp.lt.s32.totalorder %s32, 1
        %s402 = scalar_select %p401, %s32, 1
        %s403 = scalar_lea.vmem %s4, %s402
        %p404 = scmp.eq.s32.totalorder %s32, 0
        %s405 = ssub.s32 0, %s33
        %s406 = scalar_select %p404, %s33, %s405
        %s407 = smul.u32 8, %s406
        %p408 = scmp.eq.s32.totalorder %s33, 0
        // Predicated region
        $region57: #{tpu_custom_call.1} parent=39 // pred_check
          %p409 = pneg %p408
        $region58: #{tpu_custom_call.1} parent=39 // pred_check_branch
          %411 = sbr.rel (%p409) target = $region60
        $region59: #{tpu_custom_call.1} parent=39 // pred_region
          %v412 = vld [vmem:[%s334] sm:$0xff]
          %413 = vst [vmem:[#allocation2] sm:$0xff] %v412
        $region60: #{tpu_custom_call.1} parent=39 // pred_fallthru
          _
        %v414 = vld [vmem:[%s325] sm:$0xff]
        %v415 = vld [vmem:[%s325 + $0x8] sm:$0xff]
        %v416 = vld [vmem:[%s325 + $0x10] sm:$0xff]
        %v417 = vld [vmem:[%s325 + $0x18] sm:$0xff]
        %v418 = vld [vmem:[%s325 + $0x20] sm:$0xff]
        %v419 = vld [vmem:[%s325 + $0x28] sm:$0xff]
        %v420 = vld [vmem:[%s325 + $0x30] sm:$0xff]
        %v421 = vld [vmem:[%s325 + $0x38] sm:$0xff]
        %v422 = vld [vmem:[%s343] sm:$0xff]
        %v423 = vld [vmem:[%s343 + $0x8] sm:$0xff]
        %v424 = vld [vmem:[%s343 + $0x10] sm:$0xff]
        %v425 = vld [vmem:[%s343 + $0x18] sm:$0xff]
        %v426 = vld [vmem:[%s343 + $0x20] sm:$0xff]
        %v427 = vld [vmem:[%s343 + $0x28] sm:$0xff]
        %v428 = vld [vmem:[%s343 + $0x30] sm:$0xff]
        %v429 = vld [vmem:[%s343 + $0x38] sm:$0xff]
        %v430 = vld [vmem:[%s343 + $0x40] sm:$0xff]
        %v431 = vld [vmem:[%s343 + $0x48] sm:$0xff]
        %v432 = vld [vmem:[%s343 + $0x50] sm:$0xff]
        %v433 = vld [vmem:[%s343 + $0x58] sm:$0xff]
        %v434 = vld [vmem:[%s343 + $0x60] sm:$0xff]
        %v435 = vld [vmem:[%s343 + $0x68] sm:$0xff]
        %v436 = vld [vmem:[%s343 + $0x70] sm:$0xff]
        %v437 = vld [vmem:[%s343 + $0x78] sm:$0xff]
        %v438 = vld [vmem:[%s403] sm:$0x1]
        %v440 = vlaneseq
        %v441 = vshrl.u32 %v440, 7
        %v442 = vsub.s32 0, %v441
        %v443 = vrot.slane %v438, %v442
        %445 = vmatprep.subr.mxu0 0.0
        %446 = vmatpush1.msra.mxu0 %v422
        %447 = vmatprep.subr.mxu0 0.0
        %448 = vmatpush1.msra.mxu0 %v423
        %449 = vmatprep.subr.mxu0 0.0
        %450 = vmatpush1.msra.mxu0 %v424
        %451 = vmatprep.subr.mxu0 0.0
        %452 = vmatpush1.msra.mxu0 %v425
        %453 = vmatprep.subr.mxu0 0.0
        %454 = vmatpush1.msra.mxu0 %v426
        %455 = vmatprep.subr.mxu0 0.0
        %456 = vmatpush1.msra.mxu0 %v427
        %457 = vmatprep.subr.mxu0 0.0
        %458 = vmatpush1.msra.mxu0 %v428
        %459 = vmatprep.subr.mxu0 0.0
        %460 = vmatpush1.msra.mxu0 %v429
        %461 = vmatprep.subr.mxu0 0.0
        %462 = vmatpush1.msra.mxu0 %v430
        %463 = vmatprep.subr.mxu0 0.0
        %464 = vmatpush1.msra.mxu0 %v431
        %465 = vmatprep.subr.mxu0 0.0
        %466 = vmatpush1.msra.mxu0 %v432
        %467 = vmatprep.subr.mxu0 0.0
        %468 = vmatpush1.msra.mxu0 %v433
        %469 = vmatprep.subr.mxu0 0.0
        %470 = vmatpush1.msra.mxu0 %v434
        %471 = vmatprep.subr.mxu0 0.0
        %472 = vmatpush1.msra.mxu0 %v435
        %473 = vmatprep.subr.mxu0 0.0
        %474 = vmatpush1.msra.mxu0 %v436
        %475 = vmatprep.subr.mxu0 0.0
        %476 = vmatpush1.msra.mxu0 %v437
        %477 = vmatprep.subr.mxu0 0.0
        %478 = vmatpush1.msra.mxu0 0.0
        %479 = vmatprep.subr.mxu0 0.0
        %480 = vmatpush1.msra.mxu0 0.0
        %481 = vmatprep.subr.mxu0 0.0
        %482 = vmatpush1.msra.mxu0 0.0
        %483 = vmatprep.subr.mxu0 0.0
        %484 = vmatpush1.msra.mxu0 0.0
        %485 = vmatprep.subr.mxu0 0.0
        %486 = vmatpush1.msra.mxu0 0.0
        %487 = vmatprep.subr.mxu0 0.0
        %488 = vmatpush1.msra.mxu0 0.0
        %489 = vmatprep.subr.mxu0 0.0
        %490 = vmatpush1.msra.mxu0 0.0
        %491 = vmatprep.subr.mxu0 0.0
        %492 = vmatpush1.msra.mxu0 0.0
        %493 = vmatprep.subr.mxu0 0.0
        %494 = vmatpush1.msra.mxu0 0.0
        %495 = vmatprep.subr.mxu0 0.0
        %496 = vmatpush1.msra.mxu0 0.0
        %497 = vmatprep.subr.mxu0 0.0
        %498 = vmatpush1.msra.mxu0 0.0
        %499 = vmatprep.subr.mxu0 0.0
        %500 = vmatpush1.msra.mxu0 0.0
        %501 = vmatprep.subr.mxu0 0.0
        %502 = vmatpush1.msra.mxu0 0.0
        %503 = vmatprep.subr.mxu0 0.0
        %504 = vmatpush1.msra.mxu0 0.0
        %505 = vmatprep.subr.mxu0 0.0
        %506 = vmatpush1.msra.mxu0 0.0
        %507 = vmatprep.subr.mxu0 0.0
        %508 = vmatpush1.msra.mxu0 0.0
        %509 = vmatprep.mubr.f32.mxu0 0.0
        %510 = vmatmul.mubr.f32.gmra.mrb[0].mxu0 %v414
        %v511 = vpop.f32.mrb[0].mxu0
        %v512 = vadd.f32 %v443, %v511
        %v513 = vpop.f32.mrb[0].mxu0
        %514 = vmatprep.mubr.f32.mxu0 0.0
        %515 = vmatmul.mubr.f32.gmra.mrb[0].mxu0 %v415
        %v516 = vpop.f32.mrb[0].mxu0
        %v517 = vadd.f32 %v443, %v516
        %v518 = vpop.f32.mrb[0].mxu0
        %519 = vmatprep.mubr.f32.mxu0 0.0
        %520 = vmatmul.mubr.f32.gmra.mrb[0].mxu0 %v416
        %v521 = vpop.f32.mrb[0].mxu0
        %v522 = vadd.f32 %v443, %v521
        %v523 = vpop.f32.mrb[0].mxu0
        %524 = vmatprep.mubr.f32.mxu0 0.0
        %525 = vmatmul.mubr.f32.gmra.mrb[0].mxu0 %v417
        %v526 = vpop.f32.mrb[0].mxu0
        %v527 = vadd.f32 %v443, %v526
        %v528 = vpop.f32.mrb[0].mxu0
        %529 = vmatprep.mubr.f32.mxu0 0.0
        %530 = vmatmul.mubr.f32.gmra.mrb[0].mxu0 %v418
        %v531 = vpop.f32.mrb[0].mxu0
        %v532 = vadd.f32 %v443, %v531
        %v533 = vpop.f32.mrb[0].mxu0
        %534 = vmatprep.mubr.f32.mxu0 0.0
        %535 = vmatmul.mubr.f32.gmra.mrb[0].mxu0 %v419
        %v536 = vpop.f32.mrb[0].mxu0
        %v537 = vadd.f32 %v443, %v536
        %v538 = vpop.f32.mrb[0].mxu0
        %539 = vmatprep.mubr.f32.mxu0 0.0
        %540 = vmatmul.mubr.f32.gmra.mrb[0].mxu0 %v420
        %v541 = vpop.f32.mrb[0].mxu0
        %v542 = vadd.f32 %v443, %v541
        %v543 = vpop.f32.mrb[0].mxu0
        %544 = vmatprep.mubr.f32.mxu0 0.0
        %545 = vmatmul.mubr.f32.gmra.mrb[0].mxu0 %v421
        %v546 = vpop.f32.mrb[0].mxu0
        %v547 = vadd.f32 %v443, %v546
        %v548 = vpop.f32.mrb[0].mxu0
        %549 = vdwg.mxu0
        %550 = vst [vmem:[#allocation3] sm:$0xff] %v512
        %551 = vst [vmem:[#allocation3 + $0x8] sm:$0xff] %v517
        %552 = vst [vmem:[#allocation3 + $0x10] sm:$0xff] %v522
        %553 = vst [vmem:[#allocation3 + $0x18] sm:$0xff] %v527
        %554 = vst [vmem:[#allocation3 + $0x20] sm:$0xff] %v532
        %555 = vst [vmem:[#allocation3 + $0x28] sm:$0xff] %v537
        %556 = vst [vmem:[#allocation3 + $0x30] sm:$0xff] %v542
        %557 = vst [vmem:[#allocation3 + $0x38] sm:$0xff] %v547
        %v558 = vld [vmem:[%s352] sm:$0xff]
        %v559 = vld [vmem:[%s352 + $0x8] sm:$0xff]
        %v560 = vld [vmem:[%s352 + $0x10] sm:$0xff]
        %v561 = vld [vmem:[%s352 + $0x18] sm:$0xff]
        %v562 = vld [vmem:[%s352 + $0x20] sm:$0xff]
        %v563 = vld [vmem:[%s352 + $0x28] sm:$0xff]
        %v564 = vld [vmem:[%s352 + $0x30] sm:$0xff]
        %v565 = vld [vmem:[%s352 + $0x38] sm:$0xff]
        %v566 = vld [vmem:[%s352 + $0x40] sm:$0xff]
        %v567 = vld [vmem:[%s352 + $0x48] sm:$0xff]
        %v568 = vld [vmem:[%s352 + $0x50] sm:$0xff]
        %v569 = vld [vmem:[%s352 + $0x58] sm:$0xff]
        %v570 = vld [vmem:[%s352 + $0x60] sm:$0xff]
        %v571 = vld [vmem:[%s352 + $0x68] sm:$0xff]
        %v572 = vld [vmem:[%s352 + $0x70] sm:$0xff]
        %v573 = vld [vmem:[%s352 + $0x78] sm:$0xff]
        %p574 = scmp.eq.s32.totalorder %s32, 1
        %v575 = vld [vmem:[#allocation2] sm:$0xff]
        %s576 = scalar_select %p574, 7, 0
        %s577 = smul.u32 %s576, 8
        %s578 = scalar_lea.vmem [#allocation3], %s577
        %v579 = vld [vmem:[%s578] sm:$0xff]
        %580 = vmatprep.subr.mxu0 0.0
        %581 = vmatpush1.msra.mxu0 %v558
        %582 = vmatprep.subr.mxu0 0.0
        %583 = vmatpush1.msra.mxu0 %v559
        %584 = vmatprep.subr.mxu0 0.0
        %585 = vmatpush1.msra.mxu0 %v560
        %586 = vmatprep.subr.mxu0 0.0
        %587 = vmatpush1.msra.mxu0 %v561
        %588 = vmatprep.subr.mxu0 0.0
        %589 = vmatpush1.msra.mxu0 %v562
        %590 = vmatprep.subr.mxu0 0.0
        %591 = vmatpush1.msra.mxu0 %v563
        %592 = vmatprep.subr.mxu0 0.0
        %593 = vmatpush1.msra.mxu0 %v564
        %594 = vmatprep.subr.mxu0 0.0
        %595 = vmatpush1.msra.mxu0 %v565
        %596 = vmatprep.subr.mxu0 0.0
        %597 = vmatpush1.msra.mxu0 %v566
        %598 = vmatprep.subr.mxu0 0.0
        %599 = vmatpush1.msra.mxu0 %v567
        %600 = vmatprep.subr.mxu0 0.0
        %601 = vmatpush1.msra.mxu0 %v568
        %602 = vmatprep.subr.mxu0 0.0
        %603 = vmatpush1.msra.mxu0 %v569
        %604 = vmatprep.subr.mxu0 0.0
        %605 = vmatpush1.msra.mxu0 %v570
        %606 = vmatprep.subr.mxu0 0.0
        %607 = vmatpush1.msra.mxu0 %v571
        %608 = vmatprep.subr.mxu0 0.0
        %609 = vmatpush1.msra.mxu0 %v572
        %610 = vmatprep.subr.mxu0 0.0
        %611 = vmatpush1.msra.mxu0 %v573
        %612 = vmatprep.subr.mxu0 0.0
        %613 = vmatpush1.msra.mxu0 0.0
        %614 = vmatprep.subr.mxu0 0.0
        %615 = vmatpush1.msra.mxu0 0.0
        %616 = vmatprep.subr.mxu0 0.0
        %617 = vmatpush1.msra.mxu0 0.0
        %618 = vmatprep.subr.mxu0 0.0
        %619 = vmatpush1.msra.mxu0 0.0
        %620 = vmatprep.subr.mxu0 0.0
        %621 = vmatpush1.msra.mxu0 0.0
        %622 = vmatprep.subr.mxu0 0.0
        %623 = vmatpush1.msra.mxu0 0.0
        %624 = vmatprep.subr.mxu0 0.0
        %625 = vmatpush1.msra.mxu0 0.0
        %626 = vmatprep.subr.mxu0 0.0
        %627 = vmatpush1.msra.mxu0 0.0
        %628 = vmatprep.subr.mxu0 0.0
        %629 = vmatpush1.msra.mxu0 0.0
        %630 = vmatprep.subr.mxu0 0.0
        %631 = vmatpush1.msra.mxu0 0.0
        %632 = vmatprep.subr.mxu0 0.0
        %633 = vmatpush1.msra.mxu0 0.0
        %634 = vmatprep.subr.mxu0 0.0
        %635 = vmatpush1.msra.mxu0 0.0
        %636 = vmatprep.subr.mxu0 0.0
        %637 = vmatpush1.msra.mxu0 0.0
        %638 = vmatprep.subr.mxu0 0.0
        %639 = vmatpush1.msra.mxu0 0.0
        %640 = vmatprep.subr.mxu0 0.0
        %641 = vmatpush1.msra.mxu0 0.0
        %642 = vmatprep.subr.mxu0 0.0
        %643 = vmatpush1.msra.mxu0 0.0
        %644 = vmatprep.mubr.f32.mxu0 0.0
        %645 = vmatmul.mubr.f32.gmra.mrb[0].mxu0 %v575
        %v646 = vpop.f32.mrb[0].mxu0
        %v647 = vadd.f32 0.0, %v646
        %v648 = vpop.f32.mrb[0].mxu0
        %649 = vdwg.mxu0
        %v650 = vadd.f32 %v579, %v647
        %v651 = vtanh.pop %v650
        %s652 = scalar_lea.vmem %s396, %s577 [#allocation12]
        %653 = vst [vmem:[%s652] sm:$0xff] %v651
        %s654 = scalar_select %p574, 6, 1
        %s655 = smul.u32 %s654, 8
        %s656 = scalar_lea.vmem [#allocation3], %s655
        %v657 = vld [vmem:[%s656] sm:$0xff]
        %658 = vmatprep.subr.mxu0 0.0
        %659 = vmatpush1.msra.mxu0 %v558
        %660 = vmatprep.subr.mxu0 0.0
        %661 = vmatpush1.msra.mxu0 %v559
        %662 = vmatprep.subr.mxu0 0.0
        %663 = vmatpush1.msra.mxu0 %v560
        %664 = vmatprep.subr.mxu0 0.0
        %665 = vmatpush1.msra.mxu0 %v561
        %666 = vmatprep.subr.mxu0 0.0
        %667 = vmatpush1.msra.mxu0 %v562
        %668 = vmatprep.subr.mxu0 0.0
        %669 = vmatpush1.msra.mxu0 %v563
        %670 = vmatprep.subr.mxu0 0.0
        %671 = vmatpush1.msra.mxu0 %v564
        %672 = vmatprep.subr.mxu0 0.0
        %673 = vmatpush1.msra.mxu0 %v565
        %674 = vmatprep.subr.mxu0 0.0
        %675 = vmatpush1.msra.mxu0 %v566
        %676 = vmatprep.subr.mxu0 0.0
        %677 = vmatpush1.msra.mxu0 %v567
        %678 = vmatprep.subr.mxu0 0.0
        %679 = vmatpush1.msra.mxu0 %v568
        %680 = vmatprep.subr.mxu0 0.0
        %681 = vmatpush1.msra.mxu0 %v569
        %682 = vmatprep.subr.mxu0 0.0
        %683 = vmatpush1.msra.mxu0 %v570
        %684 = vmatprep.subr.mxu0 0.0
        %685 = vmatpush1.msra.mxu0 %v571
        %686 = vmatprep.subr.mxu0 0.0
        %687 = vmatpush1.msra.mxu0 %v572
        %688 = vmatprep.subr.mxu0 0.0
        %689 = vmatpush1.msra.mxu0 %v573
        %690 = vmatprep.subr.mxu0 0.0
        %691 = vmatpush1.msra.mxu0 0.0
        %692 = vmatprep.subr.mxu0 0.0
        %693 = vmatpush1.msra.mxu0 0.0
        %694 = vmatprep.subr.mxu0 0.0
        %695 = vmatpush1.msra.mxu0 0.0
        %696 = vmatprep.subr.mxu0 0.0
        %697 = vmatpush1.msra.mxu0 0.0
        %698 = vmatprep.subr.mxu0 0.0
        %699 = vmatpush1.msra.mxu0 0.0
        %700 = vmatprep.subr.mxu0 0.0
        %701 = vmatpush1.msra.mxu0 0.0
        %702 = vmatprep.subr.mxu0 0.0
        %703 = vmatpush1.msra.mxu0 0.0
        %704 = vmatprep.subr.mxu0 0.0
        %705 = vmatpush1.msra.mxu0 0.0
        %706 = vmatprep.subr.mxu0 0.0
        %707 = vmatpush1.msra.mxu0 0.0
        %708 = vmatprep.subr.mxu0 0.0
        %709 = vmatpush1.msra.mxu0 0.0
        %710 = vmatprep.subr.mxu0 0.0
        %711 = vmatpush1.msra.mxu0 0.0
        %712 = vmatprep.subr.mxu0 0.0
        %713 = vmatpush1.msra.mxu0 0.0
        %714 = vmatprep.subr.mxu0 0.0
        %715 = vmatpush1.msra.mxu0 0.0
        %716 = vmatprep.subr.mxu0 0.0
        %717 = vmatpush1.msra.mxu0 0.0
        %718 = vmatprep.subr.mxu0 0.0
        %719 = vmatpush1.msra.mxu0 0.0
        %720 = vmatprep.subr.mxu0 0.0
        %721 = vmatpush1.msra.mxu0 0.0
        %722 = vmatprep.mubr.f32.mxu0 0.0
        %723 = vmatmul.mubr.f32.gmra.mrb[0].mxu0 %v651
        %v724 = vpop.f32.mrb[0].mxu0
        %v725 = vadd.f32 0.0, %v724
        %v726 = vpop.f32.mrb[0].mxu0
        %727 = vdwg.mxu0
        %v728 = vadd.f32 %v657, %v725
        %v729 = vtanh.pop %v728
        %s730 = scalar_lea.vmem %s396, %s655 [#allocation12]
        %731 = vst [vmem:[%s730] sm:$0xff] %v729
        %s732 = scalar_select %p574, 5, 2
        %s733 = smul.u32 %s732, 8
        %s734 = scalar_lea.vmem [#allocation3], %s733
        %v735 = vld [vmem:[%s734] sm:$0xff]
        %736 = vmatprep.subr.mxu0 0.0
        %737 = vmatpush1.msra.mxu0 %v558
        %738 = vmatprep.subr.mxu0 0.0
        %739 = vmatpush1.msra.mxu0 %v559
        %740 = vmatprep.subr.mxu0 0.0
        %741 = vmatpush1.msra.mxu0 %v560
        %742 = vmatprep.subr.mxu0 0.0
        %743 = vmatpush1.msra.mxu0 %v561
        %744 = vmatprep.subr.mxu0 0.0
        %745 = vmatpush1.msra.mxu0 %v562
        %746 = vmatprep.subr.mxu0 0.0
        %747 = vmatpush1.msra.mxu0 %v563
        %748 = vmatprep.subr.mxu0 0.0
        %749 = vmatpush1.msra.mxu0 %v564
        %750 = vmatprep.subr.mxu0 0.0
        %751 = vmatpush1.msra.mxu0 %v565
        %752 = vmatprep.subr.mxu0 0.0
        %753 = vmatpush1.msra.mxu0 %v566
        %754 = vmatprep.subr.mxu0 0.0
        %755 = vmatpush1.msra.mxu0 %v567
        %756 = vmatprep.subr.mxu0 0.0
        %757 = vmatpush1.msra.mxu0 %v568
        %758 = vmatprep.subr.mxu0 0.0
        %759 = vmatpush1.msra.mxu0 %v569
        %760 = vmatprep.subr.mxu0 0.0
        %761 = vmatpush1.msra.mxu0 %v570
        %762 = vmatprep.subr.mxu0 0.0
        %763 = vmatpush1.msra.mxu0 %v571
        %764 = vmatprep.subr.mxu0 0.0
        %765 = vmatpush1.msra.mxu0 %v572
        %766 = vmatprep.subr.mxu0 0.0
        %767 = vmatpush1.msra.mxu0 %v573
        %768 = vmatprep.subr.mxu0 0.0
        %769 = vmatpush1.msra.mxu0 0.0
        %770 = vmatprep.subr.mxu0 0.0
        %771 = vmatpush1.msra.mxu0 0.0
        %772 = vmatprep.subr.mxu0 0.0
        %773 = vmatpush1.msra.mxu0 0.0
        %774 = vmatprep.subr.mxu0 0.0
        %775 = vmatpush1.msra.mxu0 0.0
        %776 = vmatprep.subr.mxu0 0.0
        %777 = vmatpush1.msra.mxu0 0.0
        %778 = vmatprep.subr.mxu0 0.0
        %779 = vmatpush1.msra.mxu0 0.0
        %780 = vmatprep.subr.mxu0 0.0
        %781 = vmatpush1.msra.mxu0 0.0
        %782 = vmatprep.subr.mxu0 0.0
        %783 = vmatpush1.msra.mxu0 0.0
        %784 = vmatprep.subr.mxu0 0.0
        %785 = vmatpush1.msra.mxu0 0.0
        %786 = vmatprep.subr.mxu0 0.0
        %787 = vmatpush1.msra.mxu0 0.0
        %788 = vmatprep.subr.mxu0 0.0
        %789 = vmatpush1.msra.mxu0 0.0
        %790 = vmatprep.subr.mxu0 0.0
        %791 = vmatpush1.msra.mxu0 0.0
        %792 = vmatprep.subr.mxu0 0.0
        %793 = vmatpush1.msra.mxu0 0.0
        %794 = vmatprep.subr.mxu0 0.0
        %795 = vmatpush1.msra.mxu0 0.0
        %796 = vmatprep.subr.mxu0 0.0
        %797 = vmatpush1.msra.mxu0 0.0
        %798 = vmatprep.subr.mxu0 0.0
        %799 = vmatpush1.msra.mxu0 0.0
        %800 = vmatprep.mubr.f32.mxu0 0.0
        %801 = vmatmul.mubr.f32.gmra.mrb[0].mxu0 %v729
        %v802 = vpop.f32.mrb[0].mxu0
        %v803 = vadd.f32 0.0, %v802
        %v804 = vpop.f32.mrb[0].mxu0
        %805 = vdwg.mxu0
        %v806 = vadd.f32 %v735, %v803
        %v807 = vtanh.pop %v806
        %s808 = scalar_lea.vmem %s396, %s733 [#allocation12]
        %809 = vst [vmem:[%s808] sm:$0xff] %v807
        %s810 = scalar_select %p574, 4, 3
        %s811 = smul.u32 %s810, 8
        %s812 = scalar_lea.vmem [#allocation3], %s811
        %v813 = vld [vmem:[%s812] sm:$0xff]
        %814 = vmatprep.subr.mxu0 0.0
        %815 = vmatpush1.msra.mxu0 %v558
        %816 = vmatprep.subr.mxu0 0.0
        %817 = vmatpush1.msra.mxu0 %v559
        %818 = vmatprep.subr.mxu0 0.0
        %819 = vmatpush1.msra.mxu0 %v560
        %820 = vmatprep.subr.mxu0 0.0
        %821 = vmatpush1.msra.mxu0 %v561
        %822 = vmatprep.subr.mxu0 0.0
        %823 = vmatpush1.msra.mxu0 %v562
        %824 = vmatprep.subr.mxu0 0.0
        %825 = vmatpush1.msra.mxu0 %v563
        %826 = vmatprep.subr.mxu0 0.0
        %827 = vmatpush1.msra.mxu0 %v564
        %828 = vmatprep.subr.mxu0 0.0
        %829 = vmatpush1.msra.mxu0 %v565
        %830 = vmatprep.subr.mxu0 0.0
        %831 = vmatpush1.msra.mxu0 %v566
        %832 = vmatprep.subr.mxu0 0.0
        %833 = vmatpush1.msra.mxu0 %v567
        %834 = vmatprep.subr.mxu0 0.0
        %835 = vmatpush1.msra.mxu0 %v568
        %836 = vmatprep.subr.mxu0 0.0
        %837 = vmatpush1.msra.mxu0 %v569
        %838 = vmatprep.subr.mxu0 0.0
        %839 = vmatpush1.msra.mxu0 %v570
        %840 = vmatprep.subr.mxu0 0.0
        %841 = vmatpush1.msra.mxu0 %v571
        %842 = vmatprep.subr.mxu0 0.0
        %843 = vmatpush1.msra.mxu0 %v572
        %844 = vmatprep.subr.mxu0 0.0
        %845 = vmatpush1.msra.mxu0 %v573
        %846 = vmatprep.subr.mxu0 0.0
        %847 = vmatpush1.msra.mxu0 0.0
        %848 = vmatprep.subr.mxu0 0.0
        %849 = vmatpush1.msra.mxu0 0.0
        %850 = vmatprep.subr.mxu0 0.0
        %851 = vmatpush1.msra.mxu0 0.0
        %852 = vmatprep.subr.mxu0 0.0
        %853 = vmatpush1.msra.mxu0 0.0
        %854 = vmatprep.subr.mxu0 0.0
        %855 = vmatpush1.msra.mxu0 0.0
        %856 = vmatprep.subr.mxu0 0.0
        %857 = vmatpush1.msra.mxu0 0.0
        %858 = vmatprep.subr.mxu0 0.0
        %859 = vmatpush1.msra.mxu0 0.0
        %860 = vmatprep.subr.mxu0 0.0
        %861 = vmatpush1.msra.mxu0 0.0
        %862 = vmatprep.subr.mxu0 0.0
        %863 = vmatpush1.msra.mxu0 0.0
        %864 = vmatprep.subr.mxu0 0.0
        %865 = vmatpush1.msra.mxu0 0.0
        %866 = vmatprep.subr.mxu0 0.0
        %867 = vmatpush1.msra.mxu0 0.0
        %868 = vmatprep.subr.mxu0 0.0
        %869 = vmatpush1.msra.mxu0 0.0
        %870 = vmatprep.subr.mxu0 0.0
        %871 = vmatpush1.msra.mxu0 0.0
        %872 = vmatprep.subr.mxu0 0.0
        %873 = vmatpush1.msra.mxu0 0.0
        %874 = vmatprep.subr.mxu0 0.0
        %875 = vmatpush1.msra.mxu0 0.0
        %876 = vmatprep.subr.mxu0 0.0
        %877 = vmatpush1.msra.mxu0 0.0
        %878 = vmatprep.mubr.f32.mxu0 0.0
        %879 = vmatmul.mubr.f32.gmra.mrb[0].mxu0 %v807
        %v880 = vpop.f32.mrb[0].mxu0
        %v881 = vadd.f32 0.0, %v880
        %v882 = vpop.f32.mrb[0].mxu0
        %883 = vdwg.mxu0
        %v884 = vadd.f32 %v813, %v881
        %v885 = vtanh.pop %v884
        %s886 = scalar_lea.vmem %s396, %s811 [#allocation12]
        %887 = vst [vmem:[%s886] sm:$0xff] %v885
        %s888 = scalar_select %p574, 3, 4
        %s889 = smul.u32 %s888, 8
        %s890 = scalar_lea.vmem [#allocation3], %s889
        %v891 = vld [vmem:[%s890] sm:$0xff]
        %892 = vmatprep.subr.mxu0 0.0
        %893 = vmatpush1.msra.mxu0 %v558
        %894 = vmatprep.subr.mxu0 0.0
        %895 = vmatpush1.msra.mxu0 %v559
        %896 = vmatprep.subr.mxu0 0.0
        %897 = vmatpush1.msra.mxu0 %v560
        %898 = vmatprep.subr.mxu0 0.0
        %899 = vmatpush1.msra.mxu0 %v561
        %900 = vmatprep.subr.mxu0 0.0
        %901 = vmatpush1.msra.mxu0 %v562
        %902 = vmatprep.subr.mxu0 0.0
        %903 = vmatpush1.msra.mxu0 %v563
        %904 = vmatprep.subr.mxu0 0.0
        %905 = vmatpush1.msra.mxu0 %v564
        %906 = vmatprep.subr.mxu0 0.0
        %907 = vmatpush1.msra.mxu0 %v565
        %908 = vmatprep.subr.mxu0 0.0
        %909 = vmatpush1.msra.mxu0 %v566
        %910 = vmatprep.subr.mxu0 0.0
        %911 = vmatpush1.msra.mxu0 %v567
        %912 = vmatprep.subr.mxu0 0.0
        %913 = vmatpush1.msra.mxu0 %v568
        %914 = vmatprep.subr.mxu0 0.0
        %915 = vmatpush1.msra.mxu0 %v569
        %916 = vmatprep.subr.mxu0 0.0
        %917 = vmatpush1.msra.mxu0 %v570
        %918 = vmatprep.subr.mxu0 0.0
        %919 = vmatpush1.msra.mxu0 %v571
        %920 = vmatprep.subr.mxu0 0.0
        %921 = vmatpush1.msra.mxu0 %v572
        %922 = vmatprep.subr.mxu0 0.0
        %923 = vmatpush1.msra.mxu0 %v573
        %924 = vmatprep.subr.mxu0 0.0
        %925 = vmatpush1.msra.mxu0 0.0
        %926 = vmatprep.subr.mxu0 0.0
        %927 = vmatpush1.msra.mxu0 0.0
        %928 = vmatprep.subr.mxu0 0.0
        %929 = vmatpush1.msra.mxu0 0.0
        %930 = vmatprep.subr.mxu0 0.0
        %931 = vmatpush1.msra.mxu0 0.0
        %932 = vmatprep.subr.mxu0 0.0
        %933 = vmatpush1.msra.mxu0 0.0
        %934 = vmatprep.subr.mxu0 0.0
        %935 = vmatpush1.msra.mxu0 0.0
        %936 = vmatprep.subr.mxu0 0.0
        %937 = vmatpush1.msra.mxu0 0.0
        %938 = vmatprep.subr.mxu0 0.0
        %939 = vmatpush1.msra.mxu0 0.0
        %940 = vmatprep.subr.mxu0 0.0
        %941 = vmatpush1.msra.mxu0 0.0
        %942 = vmatprep.subr.mxu0 0.0
        %943 = vmatpush1.msra.mxu0 0.0
        %944 = vmatprep.subr.mxu0 0.0
        %945 = vmatpush1.msra.mxu0 0.0
        %946 = vmatprep.subr.mxu0 0.0
        %947 = vmatpush1.msra.mxu0 0.0
        %948 = vmatprep.subr.mxu0 0.0
        %949 = vmatpush1.msra.mxu0 0.0
        %950 = vmatprep.subr.mxu0 0.0
        %951 = vmatpush1.msra.mxu0 0.0
        %952 = vmatprep.subr.mxu0 0.0
        %953 = vmatpush1.msra.mxu0 0.0
        %954 = vmatprep.subr.mxu0 0.0
        %955 = vmatpush1.msra.mxu0 0.0
        %956 = vmatprep.mubr.f32.mxu0 0.0
        %957 = vmatmul.mubr.f32.gmra.mrb[0].mxu0 %v885
        %v958 = vpop.f32.mrb[0].mxu0
        %v959 = vadd.f32 0.0, %v958
        %v960 = vpop.f32.mrb[0].mxu0
        %961 = vdwg.mxu0
        %v962 = vadd.f32 %v891, %v959
        %v963 = vtanh.pop %v962
        %s964 = scalar_lea.vmem %s396, %s889 [#allocation12]
        %965 = vst [vmem:[%s964] sm:$0xff] %v963
        %s966 = scalar_select %p574, 2, 5
        %s967 = smul.u32 %s966, 8
        %s968 = scalar_lea.vmem [#allocation3], %s967
        %v969 = vld [vmem:[%s968] sm:$0xff]
        %970 = vmatprep.subr.mxu0 0.0
        %971 = vmatpush1.msra.mxu0 %v558
        %972 = vmatprep.subr.mxu0 0.0
        %973 = vmatpush1.msra.mxu0 %v559
        %974 = vmatprep.subr.mxu0 0.0
        %975 = vmatpush1.msra.mxu0 %v560
        %976 = vmatprep.subr.mxu0 0.0
        %977 = vmatpush1.msra.mxu0 %v561
        %978 = vmatprep.subr.mxu0 0.0
        %979 = vmatpush1.msra.mxu0 %v562
        %980 = vmatprep.subr.mxu0 0.0
        %981 = vmatpush1.msra.mxu0 %v563
        %982 = vmatprep.subr.mxu0 0.0
        %983 = vmatpush1.msra.mxu0 %v564
        %984 = vmatprep.subr.mxu0 0.0
        %985 = vmatpush1.msra.mxu0 %v565
        %986 = vmatprep.subr.mxu0 0.0
        %987 = vmatpush1.msra.mxu0 %v566
        %988 = vmatprep.subr.mxu0 0.0
        %989 = vmatpush1.msra.mxu0 %v567
        %990 = vmatprep.subr.mxu0 0.0
        %991 = vmatpush1.msra.mxu0 %v568
        %992 = vmatprep.subr.mxu0 0.0
        %993 = vmatpush1.msra.mxu0 %v569
        %994 = vmatprep.subr.mxu0 0.0
        %995 = vmatpush1.msra.mxu0 %v570
        %996 = vmatprep.subr.mxu0 0.0
        %997 = vmatpush1.msra.mxu0 %v571
        %998 = vmatprep.subr.mxu0 0.0
        %999 = vmatpush1.msra.mxu0 %v572
        %1000 = vmatprep.subr.mxu0 0.0
        %1001 = vmatpush1.msra.mxu0 %v573
        %1002 = vmatprep.subr.mxu0 0.0
        %1003 = vmatpush1.msra.mxu0 0.0
        %1004 = vmatprep.subr.mxu0 0.0
        %1005 = vmatpush1.msra.mxu0 0.0
        %1006 = vmatprep.subr.mxu0 0.0
        %1007 = vmatpush1.msra.mxu0 0.0
        %1008 = vmatprep.subr.mxu0 0.0
        %1009 = vmatpush1.msra.mxu0 0.0
        %1010 = vmatprep.subr.mxu0 0.0
        %1011 = vmatpush1.msra.mxu0 0.0
        %1012 = vmatprep.subr.mxu0 0.0
        %1013 = vmatpush1.msra.mxu0 0.0
        %1014 = vmatprep.subr.mxu0 0.0
        %1015 = vmatpush1.msra.mxu0 0.0
        %1016 = vmatprep.subr.mxu0 0.0
        %1017 = vmatpush1.msra.mxu0 0.0
        %1018 = vmatprep.subr.mxu0 0.0
        %1019 = vmatpush1.msra.mxu0 0.0
        %1020 = vmatprep.subr.mxu0 0.0
        %1021 = vmatpush1.msra.mxu0 0.0
        %1022 = vmatprep.subr.mxu0 0.0
        %1023 = vmatpush1.msra.mxu0 0.0
        %1024 = vmatprep.subr.mxu0 0.0
        %1025 = vmatpush1.msra.mxu0 0.0
        %1026 = vmatprep.subr.mxu0 0.0
        %1027 = vmatpush1.msra.mxu0 0.0
        %1028 = vmatprep.subr.mxu0 0.0
        %1029 = vmatpush1.msra.mxu0 0.0
        %1030 = vmatprep.subr.mxu0 0.0
        %1031 = vmatpush1.msra.mxu0 0.0
        %1032 = vmatprep.subr.mxu0 0.0
        %1033 = vmatpush1.msra.mxu0 0.0
        %1034 = vmatprep.mubr.f32.mxu0 0.0
        %1035 = vmatmul.mubr.f32.gmra.mrb[0].mxu0 %v963
        %v1036 = vpop.f32.mrb[0].mxu0
        %v1037 = vadd.f32 0.0, %v1036
        %v1038 = vpop.f32.mrb[0].mxu0
        %1039 = vdwg.mxu0
        %v1040 = vadd.f32 %v969, %v1037
        %v1041 = vtanh.pop %v1040
        %s1042 = scalar_lea.vmem %s396, %s967 [#allocation12]
        %1043 = vst [vmem:[%s1042] sm:$0xff] %v1041
        %s1044 = scalar_select %p574, 1, 6
        %s1045 = smul.u32 %s1044, 8
        %s1046 = scalar_lea.vmem [#allocation3], %s1045
        %v1047 = vld [vmem:[%s1046] sm:$0xff]
        %1048 = vmatprep.subr.mxu0 0.0
        %1049 = vmatpush1.msra.mxu0 %v558
        %1050 = vmatprep.subr.mxu0 0.0
        %1051 = vmatpush1.msra.mxu0 %v559
        %1052 = vmatprep.subr.mxu0 0.0
        %1053 = vmatpush1.msra.mxu0 %v560
        %1054 = vmatprep.subr.mxu0 0.0
        %1055 = vmatpush1.msra.mxu0 %v561
        %1056 = vmatprep.subr.mxu0 0.0
        %1057 = vmatpush1.msra.mxu0 %v562
        %1058 = vmatprep.subr.mxu0 0.0
        %1059 = vmatpush1.msra.mxu0 %v563
        %1060 = vmatprep.subr.mxu0 0.0
        %1061 = vmatpush1.msra.mxu0 %v564
        %1062 = vmatprep.subr.mxu0 0.0
        %1063 = vmatpush1.msra.mxu0 %v565
        %1064 = vmatprep.subr.mxu0 0.0
        %1065 = vmatpush1.msra.mxu0 %v566
        %1066 = vmatprep.subr.mxu0 0.0
        %1067 = vmatpush1.msra.mxu0 %v567
        %1068 = vmatprep.subr.mxu0 0.0
        %1069 = vmatpush1.msra.mxu0 %v568
        %1070 = vmatprep.subr.mxu0 0.0
        %1071 = vmatpush1.msra.mxu0 %v569
        %1072 = vmatprep.subr.mxu0 0.0
        %1073 = vmatpush1.msra.mxu0 %v570
        %1074 = vmatprep.subr.mxu0 0.0
        %1075 = vmatpush1.msra.mxu0 %v571
        %1076 = vmatprep.subr.mxu0 0.0
        %1077 = vmatpush1.msra.mxu0 %v572
        %1078 = vmatprep.subr.mxu0 0.0
        %1079 = vmatpush1.msra.mxu0 %v573
        %1080 = vmatprep.subr.mxu0 0.0
        %1081 = vmatpush1.msra.mxu0 0.0
        %1082 = vmatprep.subr.mxu0 0.0
        %1083 = vmatpush1.msra.mxu0 0.0
        %1084 = vmatprep.subr.mxu0 0.0
        %1085 = vmatpush1.msra.mxu0 0.0
        %1086 = vmatprep.subr.mxu0 0.0
        %1087 = vmatpush1.msra.mxu0 0.0
        %1088 = vmatprep.subr.mxu0 0.0
        %1089 = vmatpush1.msra.mxu0 0.0
        %1090 = vmatprep.subr.mxu0 0.0
        %1091 = vmatpush1.msra.mxu0 0.0
        %1092 = vmatprep.subr.mxu0 0.0
        %1093 = vmatpush1.msra.mxu0 0.0
        %1094 = vmatprep.subr.mxu0 0.0
        %1095 = vmatpush1.msra.mxu0 0.0
        %1096 = vmatprep.subr.mxu0 0.0
        %1097 = vmatpush1.msra.mxu0 0.0
        %1098 = vmatprep.subr.mxu0 0.0
        %1099 = vmatpush1.msra.mxu0 0.0
        %1100 = vmatprep.subr.mxu0 0.0
        %1101 = vmatpush1.msra.mxu0 0.0
        %1102 = vmatprep.subr.mxu0 0.0
        %1103 = vmatpush1.msra.mxu0 0.0
        %1104 = vmatprep.subr.mxu0 0.0
        %1105 = vmatpush1.msra.mxu0 0.0
        %1106 = vmatprep.subr.mxu0 0.0
        %1107 = vmatpush1.msra.mxu0 0.0
        %1108 = vmatprep.subr.mxu0 0.0
        %1109 = vmatpush1.msra.mxu0 0.0
        %1110 = vmatprep.subr.mxu0 0.0
        %1111 = vmatpush1.msra.mxu0 0.0
        %1112 = vmatprep.mubr.f32.mxu0 0.0
        %1113 = vmatmul.mubr.f32.gmra.mrb[0].mxu0 %v1041
        %v1114 = vpop.f32.mrb[0].mxu0
        %v1115 = vadd.f32 0.0, %v1114
        %v1116 = vpop.f32.mrb[0].mxu0
        %1117 = vdwg.mxu0
        %v1118 = vadd.f32 %v1047, %v1115
        %v1119 = vtanh.pop %v1118
        %s1120 = scalar_lea.vmem %s396, %s1045 [#allocation12]
        %1121 = vst [vmem:[%s1120] sm:$0xff] %v1119
        %s1122 = scalar_select %p574, 0, 7
        %s1123 = smul.u32 %s1122, 8
        %s1124 = scalar_lea.vmem [#allocation3], %s1123
        %v1125 = vld [vmem:[%s1124] sm:$0xff]
        %1126 = vmatprep.subr.mxu0 0.0
        %1127 = vmatpush1.msra.mxu0 %v558
        %1128 = vmatprep.subr.mxu0 0.0
        %1129 = vmatpush1.msra.mxu0 %v559
        %1130 = vmatprep.subr.mxu0 0.0
        %1131 = vmatpush1.msra.mxu0 %v560
        %1132 = vmatprep.subr.mxu0 0.0
        %1133 = vmatpush1.msra.mxu0 %v561
        %1134 = vmatprep.subr.mxu0 0.0
        %1135 = vmatpush1.msra.mxu0 %v562
        %1136 = vmatprep.subr.mxu0 0.0
        %1137 = vmatpush1.msra.mxu0 %v563
        %1138 = vmatprep.subr.mxu0 0.0
        %1139 = vmatpush1.msra.mxu0 %v564
        %1140 = vmatprep.subr.mxu0 0.0
        %1141 = vmatpush1.msra.mxu0 %v565
        %1142 = vmatprep.subr.mxu0 0.0
        %1143 = vmatpush1.msra.mxu0 %v566
        %1144 = vmatprep.subr.mxu0 0.0
        %1145 = vmatpush1.msra.mxu0 %v567
        %1146 = vmatprep.subr.mxu0 0.0
        %1147 = vmatpush1.msra.mxu0 %v568
        %1148 = vmatprep.subr.mxu0 0.0
        %1149 = vmatpush1.msra.mxu0 %v569
        %1150 = vmatprep.subr.mxu0 0.0
        %1151 = vmatpush1.msra.mxu0 %v570
        %1152 = vmatprep.subr.mxu0 0.0
        %1153 = vmatpush1.msra.mxu0 %v571
        %1154 = vmatprep.subr.mxu0 0.0
        %1155 = vmatpush1.msra.mxu0 %v572
        %1156 = vmatprep.subr.mxu0 0.0
        %1157 = vmatpush1.msra.mxu0 %v573
        %1158 = vmatprep.subr.mxu0 0.0
        %1159 = vmatpush1.msra.mxu0 0.0
        %1160 = vmatprep.subr.mxu0 0.0
        %1161 = vmatpush1.msra.mxu0 0.0
        %1162 = vmatprep.subr.mxu0 0.0
        %1163 = vmatpush1.msra.mxu0 0.0
        %1164 = vmatprep.subr.mxu0 0.0
        %1165 = vmatpush1.msra.mxu0 0.0
        %1166 = vmatprep.subr.mxu0 0.0
        %1167 = vmatpush1.msra.mxu0 0.0
        %1168 = vmatprep.subr.mxu0 0.0
        %1169 = vmatpush1.msra.mxu0 0.0
        %1170 = vmatprep.subr.mxu0 0.0
        %1171 = vmatpush1.msra.mxu0 0.0
        %1172 = vmatprep.subr.mxu0 0.0
        %1173 = vmatpush1.msra.mxu0 0.0
        %1174 = vmatprep.subr.mxu0 0.0
        %1175 = vmatpush1.msra.mxu0 0.0
        %1176 = vmatprep.subr.mxu0 0.0
        %1177 = vmatpush1.msra.mxu0 0.0
        %1178 = vmatprep.subr.mxu0 0.0
        %1179 = vmatpush1.msra.mxu0 0.0
        %1180 = vmatprep.subr.mxu0 0.0
        %1181 = vmatpush1.msra.mxu0 0.0
        %1182 = vmatprep.subr.mxu0 0.0
        %1183 = vmatpush1.msra.mxu0 0.0
        %1184 = vmatprep.subr.mxu0 0.0
        %1185 = vmatpush1.msra.mxu0 0.0
        %1186 = vmatprep.subr.mxu0 0.0
        %1187 = vmatpush1.msra.mxu0 0.0
        %1188 = vmatprep.subr.mxu0 0.0
        %1189 = vmatpush1.msra.mxu0 0.0
        %1190 = vmatprep.mubr.f32.mxu0 0.0
        %1191 = vmatmul.mubr.f32.gmra.mrb[0].mxu0 %v1119
        %v1192 = vpop.f32.mrb[0].mxu0
        %v1193 = vadd.f32 0.0, %v1192
        %v1194 = vpop.f32.mrb[0].mxu0
        %1195 = vdwg.mxu0
        %v1196 = vadd.f32 %v1125, %v1193
        %v1197 = vtanh.pop %v1196
        %s1198 = scalar_lea.vmem %s396, %s1123 [#allocation12]
        %1199 = vst [vmem:[%s1198] sm:$0xff] %v1197
        %1200 = vst [vmem:[#allocation2] sm:$0xff] %v1197
        %s1201 = sand.u32 %s192, 1
        %s1202 = scalar_lea.sflag [#allocation6], %s1201
        %s1203 = sand.u32 %s192, 1
        %s1204 = smul.addr %s1203, 64
        %s1205 = scalar_lea.vmem [#allocation12], %s1204
        // Predicated region
        $region61: #{tpu_custom_call.1} parent=39 // pred_check
          %p1206 = pneg %p202
        $region62: #{tpu_custom_call.1} parent=39 // pred_check_branch
          %1208 = sbr.rel (%p1206) target = $region64
        $region63: #{tpu_custom_call.1} parent=39 // pred_region
          %p1209 = scmp.eq.s32.totalorder %s32, 0
          %s1210 = ssub.s32 0, %s33
          %s1211 = scalar_select %p1209, %s33, %s1210
          %s1212 = smul.u32 8, %s1211
          %s1214 = ssub.s32 1024, 1024
          %1215 = vsyncadd %s1202, %s1214
          %s1216 = smul.addr %s32, 8
          %s1217 = sadd.s32 %s1212, %s1216
          %s1218 = smul.addr %s1217, 128
          %s1219 = scalar_lea.hbm %s5, %s1218
          %s1220 = sshll.u32 %s1205, 4
          %s1221 = int_to_ptr.vmem [resolvable:$true] %s1220
          %1226 = dma.vmem_to_hbm [thread:$0]  %s1221, 1024, %s1219, %s1202, 128, 128, 8
        $region64: #{tpu_custom_call.1} parent=39 // pred_fallthru
          _
      $region40: #{tpu_custom_call.1} parent=5 // pred_fallthru
        _
      %p1227 = scmp.le.s32.totalorder 2, %s23
      // Predicated region
      $region65: #{tpu_custom_call.1} parent=5 // pred_check
        %p1228 = pneg %p1227
      $region66: #{tpu_custom_call.1} parent=5 // pred_check_branch
        %1230 = sbr.rel (%p1228) target = $region68
      $region67: #{tpu_custom_call.1} parent=5 // pred_region
        %s1231 = ssub.s32 %s23, 2
        // Predicated region
        $region69: #{tpu_custom_call.1} parent=67 // pred_check
          %p1232 = pneg %p208
        $region70: #{tpu_custom_call.1} parent=67 // pred_check_branch
          %1234 = sbr.rel (%p1232) target = $region72
        $region71: #{tpu_custom_call.1} parent=67 // pred_region
          %s1235 = sand.u32 %s193, 1
          %s1236 = scalar_lea.sflag [#allocation6], %s1235
          %s1237 = sand.u32 %s193, 1
          %s1238 = smul.addr %s1237, 64
          %s1239 = scalar_lea.vmem [#allocation12], %s1238
          %1240 = dma.done %s1236, 1024
        $region72: #{tpu_custom_call.1} parent=67 // pred_fallthru
          _
      $region68: #{tpu_custom_call.1} parent=5 // pred_fallthru
        _
    $region6: #{tpu_custom_call.1} parent=1 // loop_footer
      %s27 = sadd.s32 1, %s23
    $region7: #{tpu_custom_call.1} parent=1 // loop_footer_branch
      %22 = sbr.rel target = $region3
    $region8: #{tpu_custom_call.1} parent=1 // loop_exit
      _
    %1241 = vsyncpa [#allocation5], 1
    %s1242 = scalar_lea.sflag [#allocation5], 1
    %1243 = vsyncpa %s1242, 1
    %1244 = vsyncpa [#allocation8], 1
    %s1245 = scalar_lea.sflag [#allocation8], 1
    %1246 = vsyncpa %s1245, 1
    %1247 = vsyncpa [#allocation11], 1
    %s1248 = scalar_lea.sflag [#allocation11], 1
    %1249 = vsyncpa %s1248, 1
    %1250 = vsyncpa [#allocation6], 1
    %s1251 = scalar_lea.sflag [#allocation6], 1
    %1252 = vsyncpa %s1251, 1

</llo_original>
